<compile_context>
chip_gen: v5e
topology: v5e:2x2
jax: 0.10.0
libtpu: 0.0.40
codegen_flags: <defaults>
</compile_context>

<pallas_src>
import jax
import jax.numpy as jnp
from jax.experimental import pallas as pl
from jax.experimental.pallas import tpu as pltpu

# ---------------- model configuration (consistent with the module) ----------------
IN_FEATURES = 16           # base input feature width
BASE_HIDDEN = (32, 32)     # base assumed to be torchrl MLPBase
APPEND_HIDDEN = (32,)      # append_hidden_shapes
ORIGIN_OUT = 5             # origin_output_shape
HEAD_NUM = 4               # head_num
OUT_TOTAL = ORIGIN_OUT * HEAD_NUM   # 20

LANE = 128                 # TPU lane width; weights / intermediates padded to this
BATCH = 512                # main test batch (cheap; exercises the multi-tile path)

# ----- fused parameter slab layout (rows; all offsets multiples of 16 for bf16 tiling) -----
R_W0 = 0                         # (IN_FEATURES, 128)  : w0 in [:, :32]
R_W1 = R_W0 + IN_FEATURES        # (128, 128)          : w1 in [:32, :32]
R_WA = R_W1 + LANE               # (128, 128)          : wa in [:32, :32]
R_WL = R_WA + LANE               # (128, 128)          : wl in [:32, :20]
R_SEL = R_WL + LANE              # (128, 128)          : head-selection matrix in [:20, :5]
R_BIAS = R_SEL + LANE            # (16, 128)           : rows 0..3 = b0, b1, ba, bl
SLAB_ROWS = R_BIAS + 16          # 544


def bootstrapped_net_kernel(x_ref, idx_ref, slab_ref, out_ref):
    f32 = jnp.float32
    bf16 = jnp.bfloat16

    # Bias block is tiny (2 f32 vregs); load once, slice rows as needed.
    bias = slab_ref[R_BIAS:R_BIAS + 16, :].astype(f32)        # (16, 128)

    # ---- base MLP (Linear + ReLU), bf16 operands, f32 accumulation ----
    # Weight slices are loaded immediately before the dot that consumes them to
    # keep vreg live ranges short.
    x = x_ref[...].astype(bf16)                               # (tile, 16)
    w0 = slab_ref[R_W0:R_W0 + IN_FEATURES, :]                 # (16, 128) bf16
    h = jnp.maximum(jnp.dot(x, w0, preferred_element_type=f32) + bias[0:1, :], 0.0)

    w1 = slab_ref[R_W1:R_W1 + LANE, :]                        # (128, 128) bf16
    h = jnp.maximum(jnp.dot(h.astype(bf16), w1, preferred_element_type=f32)
                    + bias[1:2, :], 0.0)

    # ---- append_fc0 + activation ----
    wa = slab_ref[R_WA:R_WA + LANE, :]                        # (128, 128) bf16
    h = jnp.maximum(jnp.dot(h.astype(bf16), wa, preferred_element_type=f32)
                    + bias[2:3, :], 0.0)

    # ---- last linear: lane-dense (tile, 128); real logits live in cols [0, 20) ----
    wl = slab_ref[R_WL:R_WL + LANE, :]                        # (128, 128) bf16
    logits = jnp.dot(h.astype(bf16), wl, preferred_element_type=f32) + bias[3:4, :]

    # ---- per-row head gather, mask built in-kernel from idx ----
    # flat column c -> head = c % HEAD_NUM;  keep column iff head == idx[row] and c < OUT_TOTAL.
    idx_col = idx_ref[...]                                    # (tile, 1) int32
    col = jax.lax.broadcasted_iota(jnp.int32, logits.shape, 1)
    if HEAD_NUM & (HEAD_NUM - 1) == 0:                        # power-of-two fast path
        head_of_col = col & (HEAD_NUM - 1)
    else:
        head_of_col = col % HEAD_NUM
    mask = (head_of_col == idx_col) & (col < OUT_TOTAL)
    masked = jnp.where(mask, logits, 0.0)                     # (tile, 128) f32

    # Sum each HEAD_NUM group via the constant 0/1 selection matrix (MXU).
    sel = slab_ref[R_SEL:R_SEL + LANE, :].astype(f32)         # (128, 128)
    gathered = jnp.dot(masked, sel, preferred_element_type=f32)   # (tile, 128)

    # Narrow store: only the ORIGIN_OUT real columns go back to HBM.
    out_ref[...] = gathered[:, :ORIGIN_OUT]


def _round_up(x, m):
    return -(-x // m) * m


def _choose_tiling(batch):
    """Generation-aware batch tiling (trace-time, static).

    v7x has 2 TensorCores -> keep an even grid >= 2 when the batch allows it.
    v5e/v6e are single-TC  -> minimize grid steps (one big tile, up to 1024 rows).
    """
    kind = ""
    try:
        kind = jax.devices()[0].device_kind.lower()
    except Exception:  # pragma: no cover - defensive; fall back to single-TC policy
        pass
    two_tc = "v7" in kind

    b8 = _round_up(max(batch, 8), 8)            # sublane-aligned padded batch
    if two_tc and b8 >= 512:
        n_tiles = max(2, _round_up(-(-b8 // 1024), 2))   # even tile count >= 2
    else:
        n_tiles = -(-b8 // 1024)                         # as few steps as possible
        n_tiles = max(n_tiles, 1)
    tile = _round_up(-(-b8 // n_tiles), 8)
    return tile, n_tiles


@jax.jit
def bootstrapped_net_forward(x, idx, slab):
    """x: (B, IN_FEATURES) f32, idx: (B,) int -> (B, ORIGIN_OUT) f32."""
    B = x.shape[0]
    tile, n_tiles = _choose_tiling(B)
    B_pad = tile * n_tiles

    # Clamp idx (torch.gather would error on out-of-range indices; we clamp instead).
    idx2 = jnp.clip(idx.astype(jnp.int32), 0, HEAD_NUM - 1).reshape(B, 1)

    if B_pad != B:
        x = jnp.pad(x, ((0, B_pad - B), (0, 0)))
        idx2 = jnp.pad(idx2, ((0, B_pad - B), (0, 0)))

    out_pad = pl.pallas_call(
        bootstrapped_net_kernel,
        out_shape=jax.ShapeDtypeStruct((B_pad, ORIGIN_OUT), jnp.float32),
        grid=(n_tiles,),
        in_specs=[
            pl.BlockSpec((tile, IN_FEATURES), lambda i: (i, 0)),   # x tile (f32)
            pl.BlockSpec((tile, 1), lambda i: (i, 0)),             # per-row head idx
            pl.BlockSpec((SLAB_ROWS, LANE), lambda i: (0, 0)),     # fused params (resident)
        ],
        out_specs=pl.BlockSpec((tile, ORIGIN_OUT), lambda i: (i, 0)),
        compiler_params=pltpu.CompilerParams(dimension_semantics=("parallel",)),
    )(x, idx2, slab)

    return out_pad[:B]


def reference_forward(x, idx, params):
    """Pure-JAX reference with the same precision policy (bf16 matmul operands, f32 acc)."""
    bf16, f32 = jnp.bfloat16, jnp.float32

    def layer(h, w, b, act=True):
        z = jnp.dot(h.astype(bf16), w.astype(bf16), preferred_element_type=f32)
        z = z + b.astype(bf16).astype(f32)
        return jnp.maximum(z, 0.0) if act else z

    h = layer(x, params["w0"], params["b0"])
    h = layer(h, params["w1"], params["b1"])
    h = layer(h, params["wa"], params["ba"])
    out = layer(h, params["wl"], params["bl"], act=False)            # (B, OUT_TOTAL)
    out = out.reshape(x.shape[0], ORIGIN_OUT, HEAD_NUM)
    gathered = jnp.take_along_axis(out, idx[:, None, None].astype(jnp.int32), axis=-1)
    return gathered[..., 0]


def make_params(key):
    """Deterministic synthetic init (stand-in for torchrl basic_init / uniform_init)."""
    ks = jax.random.split(key, 8)
    scale = 0.1
    return {
        "w0": scale * jax.random.normal(ks[0], (IN_FEATURES, BASE_HIDDEN[0]), jnp.float32),
        "b0": scale * jax.random.normal(ks[1], (1, BASE_HIDDEN[0]), jnp.float32),
        "w1": scale * jax.random.normal(ks[2], (BASE_HIDDEN[0], BASE_HIDDEN[1]), jnp.float32),
        "b1": scale * jax.random.normal(ks[3], (1, BASE_HIDDEN[1]), jnp.float32),
        "wa": scale * jax.random.normal(ks[4], (BASE_HIDDEN[1], APPEND_HIDDEN[0]), jnp.float32),
        "ba": scale * jax.random.normal(ks[5], (1, APPEND_HIDDEN[0]), jnp.float32),
        # net_last_init_func=uniform_init -> small uniform init on the last layer
        "wl": jax.random.uniform(ks[6], (APPEND_HIDDEN[0], OUT_TOTAL), jnp.float32,
                                 minval=-3e-3, maxval=3e-3),
        "bl": jax.random.uniform(ks[7], (1, OUT_TOTAL), jnp.float32,
                                 minval=-3e-3, maxval=3e-3),
    }


def make_param_slab(params):
    """Fuse all weights/biases + the head-selection matrix into one (SLAB_ROWS, 128) bf16 slab."""
    def place(slab, a, r0, c0=0):
        return slab.at[r0:r0 + a.shape[0], c0:c0 + a.shape[1]].set(a)

    slab = jnp.zeros((SLAB_ROWS, LANE), jnp.float32)
    slab = place(slab, params["w0"], R_W0)
    slab = place(slab, params["w1"], R_W1)
    slab = place(slab, params["wa"], R_WA)
    slab = place(slab, params["wl"], R_WL)
    # selection matrix: sel[c, o] = 1 iff flat column c belongs to output o (c // HEAD_NUM == o)
    c = jnp.arange(OUT_TOTAL)[:, None]
    o = jnp.arange(ORIGIN_OUT)[None, :]
    sel = (c // HEAD_NUM == o).astype(jnp.float32)
    slab = place(slab, sel, R_SEL)
    slab = place(slab, params["b0"], R_BIAS + 0)
    slab = place(slab, params["b1"], R_BIAS + 1)
    slab = place(slab, params["ba"], R_BIAS + 2)
    slab = place(slab, params["bl"], R_BIAS + 3)
    return slab.astype(jnp.bfloat16)


if __name__ == "__main__":
    key = jax.random.PRNGKey(0)
    k_param, k_x, k_idx, k_x2, k_idx2 = jax.random.split(key, 5)

    params = make_params(k_param)
    slab = make_param_slab(params)

    # --- main run (on v7x this splits into an even grid >= 2; single tile elsewhere) ---
    x = jax.random.normal(k_x, (BATCH, IN_FEATURES), jnp.float32)
    idx = jax.random.randint(k_idx, (BATCH,), 0, HEAD_NUM, jnp.int32)

    out = jax.block_until_ready(bootstrapped_net_forward(x, idx, slab))
    ref = reference_forward(x, idx, params)
    assert out.shape == (BATCH, ORIGIN_OUT)
    assert jnp.allclose(out, ref, atol=1e-4, rtol=1e-2), "mismatch vs pure-JAX reference"

    # --- small ragged batch (exercises the zero-pad / slice-back path) ---
    x2 = jax.random.normal(k_x2, (7, IN_FEATURES), jnp.float32)
    idx2 = jax.random.randint(k_idx2, (7,), 0, HEAD_NUM, jnp.int32)
    out2 = jax.block_until_ready(bootstrapped_net_forward(x2, idx2, slab))
    ref2 = reference_forward(x2, idx2, params)
    assert out2.shape == (7, ORIGIN_OUT)
    assert jnp.allclose(out2, ref2, atol=1e-4, rtol=1e-2), "ragged-batch mismatch"

    print("KERNEL_OK")
</pallas_src>

<mosaic_0001>
module attributes {stable_mosaic.version = 11 : i64} {
  func.func @bootstrapped_net_kernel(%arg0: i32, %arg1: memref<512x16xf32, #tpu.memory_space<vmem>>, %arg2: memref<512x1xi32, #tpu.memory_space<vmem>>, %arg3: memref<544x128xbf16, #tpu.memory_space<vmem>>, %arg4: memref<512x5xf32, #tpu.memory_space<vmem>>) attributes {dimension_semantics = [#tpu.dimension_semantics<parallel>], iteration_bounds = array<i64: 1>, scalar_prefetch = 0 : i64, scratch_operands = 0 : i64, tpu.core_type = #tpu.core_type<tc>, window_params = [{transform_indices = @transform_0, window_bounds = array<i64: 512, 16>}, {transform_indices = @transform_1, window_bounds = array<i64: 512, 1>}, {pipeline_mode = #tpu.pipeline_mode<synchronous>, transform_indices = @transform_2, window_bounds = array<i64: 544, 128>}, {transform_indices = @transform_3, window_bounds = array<i64: 512, 5>}]} {
    %c528 = arith.constant 528 : index
    %c0 = arith.constant 0 : index
    %0 = vector.load %arg3[%c528, %c0] : memref<544x128xbf16, #tpu.memory_space<vmem>>, vector<16x128xbf16>
    %1 = arith.extf %0 : vector<16x128xbf16> to vector<16x128xf32>
    %c0_0 = arith.constant 0 : index
    %c0_1 = arith.constant 0 : index
    %2 = vector.load %arg1[%c0_0, %c0_1] : memref<512x16xf32, #tpu.memory_space<vmem>>, vector<512x16xf32>
    %3 = arith.truncf %2 : vector<512x16xf32> to vector<512x16xbf16>
    %c0_2 = arith.constant 0 : index
    %c0_3 = arith.constant 0 : index
    %4 = vector.load %arg3[%c0_2, %c0_3] : memref<544x128xbf16, #tpu.memory_space<vmem>>, vector<16x128xbf16>
    %cst = arith.constant dense<0.000000e+00> : vector<512x128xf32>
    %5 = tpu.matmul %3, %4, %cst {dimension_numbers = #tpu.dot_dimension_numbers<[1], [0], [0], [1], [0, 0, 1, 1], [], []>} : vector<512x16xbf16>, vector<16x128xbf16>, vector<512x128xf32> -> vector<512x128xf32>
    %6 = vector.extract_strided_slice %1 {offsets = [0, 0], sizes = [1, 128], strides = [1, 1]} : vector<16x128xf32> to vector<1x128xf32>
    %7 = vector.broadcast %6 : vector<1x128xf32> to vector<512x128xf32>
    %8 = arith.addf %5, %7 : vector<512x128xf32>
    %cst_4 = arith.constant 0.000000e+00 : f32
    %9 = vector.broadcast %cst_4 : f32 to vector<512x128xf32>
    %10 = arith.maximumf %8, %9 : vector<512x128xf32>
    %c16 = arith.constant 16 : index
    %c0_5 = arith.constant 0 : index
    %11 = vector.load %arg3[%c16, %c0_5] : memref<544x128xbf16, #tpu.memory_space<vmem>>, vector<128x128xbf16>
    %12 = arith.truncf %10 : vector<512x128xf32> to vector<512x128xbf16>
    %cst_6 = arith.constant dense<0.000000e+00> : vector<512x128xf32>
    %13 = tpu.matmul %12, %11, %cst_6 {dimension_numbers = #tpu.dot_dimension_numbers<[1], [0], [0], [1], [0, 0, 1, 1], [], []>} : vector<512x128xbf16>, vector<128x128xbf16>, vector<512x128xf32> -> vector<512x128xf32>
    %14 = vector.extract_strided_slice %1 {offsets = [1, 0], sizes = [1, 128], strides = [1, 1]} : vector<16x128xf32> to vector<1x128xf32>
    %15 = vector.broadcast %14 : vector<1x128xf32> to vector<512x128xf32>
    %16 = arith.addf %13, %15 : vector<512x128xf32>
    %cst_7 = arith.constant 0.000000e+00 : f32
    %17 = vector.broadcast %cst_7 : f32 to vector<512x128xf32>
    %18 = arith.maximumf %16, %17 : vector<512x128xf32>
    %c144 = arith.constant 144 : index
    %c0_8 = arith.constant 0 : index
    %19 = vector.load %arg3[%c144, %c0_8] : memref<544x128xbf16, #tpu.memory_space<vmem>>, vector<128x128xbf16>
    %20 = arith.truncf %18 : vector<512x128xf32> to vector<512x128xbf16>
    %cst_9 = arith.constant dense<0.000000e+00> : vector<512x128xf32>
    %21 = tpu.matmul %20, %19, %cst_9 {dimension_numbers = #tpu.dot_dimension_numbers<[1], [0], [0], [1], [0, 0, 1, 1], [], []>} : vector<512x128xbf16>, vector<128x128xbf16>, vector<512x128xf32> -> vector<512x128xf32>
    %22 = vector.extract_strided_slice %1 {offsets = [2, 0], sizes = [1, 128], strides = [1, 1]} : vector<16x128xf32> to vector<1x128xf32>
    %23 = vector.broadcast %22 : vector<1x128xf32> to vector<512x128xf32>
    %24 = arith.addf %21, %23 : vector<512x128xf32>
    %cst_10 = arith.constant 0.000000e+00 : f32
    %25 = vector.broadcast %cst_10 : f32 to vector<512x128xf32>
    %26 = arith.maximumf %24, %25 : vector<512x128xf32>
    %c272 = arith.constant 272 : index
    %c0_11 = arith.constant 0 : index
    %27 = vector.load %arg3[%c272, %c0_11] : memref<544x128xbf16, #tpu.memory_space<vmem>>, vector<128x128xbf16>
    %28 = arith.truncf %26 : vector<512x128xf32> to vector<512x128xbf16>
    %cst_12 = arith.constant dense<0.000000e+00> : vector<512x128xf32>
    %29 = tpu.matmul %28, %27, %cst_12 {dimension_numbers = #tpu.dot_dimension_numbers<[1], [0], [0], [1], [0, 0, 1, 1], [], []>} : vector<512x128xbf16>, vector<128x128xbf16>, vector<512x128xf32> -> vector<512x128xf32>
    %30 = vector.extract_strided_slice %1 {offsets = [3, 0], sizes = [1, 128], strides = [1, 1]} : vector<16x128xf32> to vector<1x128xf32>
    %31 = vector.broadcast %30 : vector<1x128xf32> to vector<512x128xf32>
    %32 = arith.addf %29, %31 : vector<512x128xf32>
    %c0_13 = arith.constant 0 : index
    %c0_14 = arith.constant 0 : index
    %33 = vector.load %arg2[%c0_13, %c0_14] : memref<512x1xi32, #tpu.memory_space<vmem>>, vector<512x1xi32>
    %34 = tpu.iota {dimensions = array<i32: 1>} : vector<512x128xi32>
    %c3_i32 = arith.constant 3 : i32
    %35 = vector.broadcast %c3_i32 : i32 to vector<512x128xi32>
    %36 = arith.andi %34, %35 : vector<512x128xi32>
    %37 = vector.broadcast %33 : vector<512x1xi32> to vector<512x128xi32>
    %38 = arith.cmpi eq, %36, %37 : vector<512x128xi32>
    %c20_i32 = arith.constant 20 : i32
    %39 = vector.broadcast %c20_i32 : i32 to vector<512x128xi32>
    %40 = arith.cmpi slt, %34, %39 : vector<512x128xi32>
    %41 = arith.andi %38, %40 : vector<512x128xi1>
    %cst_15 = arith.constant 0.000000e+00 : f32
    %42 = vector.broadcast %cst_15 : f32 to vector<512x128xf32>
    %43 = arith.select %41, %32, %42 : vector<512x128xi1>, vector<512x128xf32>
    %c400 = arith.constant 400 : index
    %c0_16 = arith.constant 0 : index
    %44 = vector.load %arg3[%c400, %c0_16] : memref<544x128xbf16, #tpu.memory_space<vmem>>, vector<128x128xbf16>
    %45 = arith.extf %44 : vector<128x128xbf16> to vector<128x128xf32>
    %cst_17 = arith.constant dense<0.000000e+00> : vector<512x128xf32>
    %46 = tpu.matmul %43, %45, %cst_17 {dimension_numbers = #tpu.dot_dimension_numbers<[1], [0], [0], [1], [0, 0, 1, 1], [], []>} : vector<512x128xf32>, vector<128x128xf32>, vector<512x128xf32> -> vector<512x128xf32>
    %47 = vector.extract_strided_slice %46 {offsets = [0, 0], sizes = [512, 5], strides = [1, 1]} : vector<512x128xf32> to vector<512x5xf32>
    %c0_18 = arith.constant 0 : index
    %c0_19 = arith.constant 0 : index
    %48 = vector.load %arg4[%c0_18, %c0_19] : memref<512x5xf32, #tpu.memory_space<vmem>>, vector<512x5xf32>
    tpu.vector_store %arg4[%c0_18, %c0_19], %47 {strides = array<i32>} : memref<512x5xf32, #tpu.memory_space<vmem>>, vector<512x5xf32>,
    return
  }
  func.func @transform_0(%arg0: i32) -> (i32, i32) {
    %c0_i32 = arith.constant 0 : i32
    %c0_i32_0 = arith.constant 0 : i32
    return %arg0, %c0_i32 : i32, i32
  }
  func.func @transform_1(%arg0: i32) -> (i32, i32) {
    %c0_i32 = arith.constant 0 : i32
    %c0_i32_0 = arith.constant 0 : i32
    return %arg0, %c0_i32 : i32, i32
  }
  func.func @transform_2(%arg0: i32) -> (i32, i32) {
    %c0_i32 = arith.constant 0 : i32
    %c0_i32_0 = arith.constant 0 : i32
    %c0_i32_1 = arith.constant 0 : i32
    return %c0_i32, %c0_i32_0 : i32, i32
  }
  func.func @transform_3(%arg0: i32) -> (i32, i32) {
    %c0_i32 = arith.constant 0 : i32
    %c0_i32_0 = arith.constant 0 : i32
    return %arg0, %c0_i32 : i32, i32
  }
}

</mosaic_0001>

<llo_original>
// kernel: bootstrapped_net_forward.1
$region0: #{bootstrapped_net_forward.1}
  #allocation0 [shape = 'u32[]', space=smem, size = 0x4, offset = 0x4, fixed_abs, tag = 'smem constant byte address 0x4 - core index']
  #allocation1 [shape = 'u32[72,128]{1,0:T(1,128)}', space=vmem, size = 0x9000, scoped, tag = 'internal scratch']
  %s0 = inlined_call_operand.vmem [shape: f32[512,16], index: 0, kind: input, shape index: {}]
  %s1 = inlined_call_operand.vmem [shape: s32[512,1], index: 1, kind: input, shape index: {}]
  %s2 = inlined_call_operand.vmem [shape: bf16[544,128], index: 2, kind: input, shape index: {}]
  %s3 = inlined_call_operand.vmem [shape: f32[512,5], index: 3, kind: output, shape index: {}]
  %s4 = sld [smem:[#allocation0]]
  $region22: #{bootstrapped_net_forward.1} parent=0
    _
  %s6 = ssub.s32 1, %s4
  %s7 = scalar_select 0, %s6, %s4
  // Predicated region
  $region2: #{bootstrapped_net_forward.1} parent=0 // pred_check
    _
  $region3: #{bootstrapped_net_forward.1} parent=0 // pred_check_branch
    %9 = sbr.rel (0) target = $region5
  $region4: #{bootstrapped_net_forward.1} parent=0 // pred_region
    _
  $region5: #{bootstrapped_net_forward.1} parent=0 // pred_fallthru
    _
  // Predicated region
  $region6: #{bootstrapped_net_forward.1} parent=0 // pred_check
    _
  $region7: #{bootstrapped_net_forward.1} parent=0 // pred_check_branch
    %11 = sbr.rel (0) target = $region9
  $region8: #{bootstrapped_net_forward.1} parent=0 // pred_region
    _
  $region9: #{bootstrapped_net_forward.1} parent=0 // pred_fallthru
    _
  // Predicated region
  $region10: #{bootstrapped_net_forward.1} parent=0 // pred_check
    _
  $region11: #{bootstrapped_net_forward.1} parent=0 // pred_check_branch
    %13 = sbr.rel (0) target = $region13
  $region12: #{bootstrapped_net_forward.1} parent=0 // pred_region
    _
  $region13: #{bootstrapped_net_forward.1} parent=0 // pred_fallthru
    _
  %v15 = vld [vmem:[%s2 + $0x108] sm:$0xf]
  %v16 = vunpack.c.l.bf16 %v15
  %v17 = vld [vmem:[%s0] sm:$0xff]
  %v18 = vld [vmem:[%s0 + $0x8] sm:$0xff]
  %v19 = vld [vmem:[%s0 + $0x10] sm:$0xff]
  %v20 = vld [vmem:[%s0 + $0x18] sm:$0xff]
  %v21 = vld [vmem:[%s0 + $0x20] sm:$0xff]
  %v22 = vld [vmem:[%s0 + $0x28] sm:$0xff]
  %v23 = vld [vmem:[%s0 + $0x30] sm:$0xff]
  %v24 = vld [vmem:[%s0 + $0x38] sm:$0xff]
  %v25 = vld [vmem:[%s0 + $0x40] sm:$0xff]
  %v26 = vld [vmem:[%s0 + $0x48] sm:$0xff]
  %v27 = vld [vmem:[%s0 + $0x50] sm:$0xff]
  %v28 = vld [vmem:[%s0 + $0x58] sm:$0xff]
  %v29 = vld [vmem:[%s0 + $0x60] sm:$0xff]
  %v30 = vld [vmem:[%s0 + $0x68] sm:$0xff]
  %v31 = vld [vmem:[%s0 + $0x70] sm:$0xff]
  %v32 = vld [vmem:[%s0 + $0x78] sm:$0xff]
  %v33 = vld [vmem:[%s0 + $0x80] sm:$0xff]
  %v34 = vld [vmem:[%s0 + $0x88] sm:$0xff]
  %v35 = vld [vmem:[%s0 + $0x90] sm:$0xff]
  %v36 = vld [vmem:[%s0 + $0x98] sm:$0xff]
  %v37 = vld [vmem:[%s0 + $0xa0] sm:$0xff]
  %v38 = vld [vmem:[%s0 + $0xa8] sm:$0xff]
  %v39 = vld [vmem:[%s0 + $0xb0] sm:$0xff]
  %v40 = vld [vmem:[%s0 + $0xb8] sm:$0xff]
  %v41 = vld [vmem:[%s0 + $0xc0] sm:$0xff]
  %v42 = vld [vmem:[%s0 + $0xc8] sm:$0xff]
  %v43 = vld [vmem:[%s0 + $0xd0] sm:$0xff]
  %v44 = vld [vmem:[%s0 + $0xd8] sm:$0xff]
  %v45 = vld [vmem:[%s0 + $0xe0] sm:$0xff]
  %v46 = vld [vmem:[%s0 + $0xe8] sm:$0xff]
  %v47 = vld [vmem:[%s0 + $0xf0] sm:$0xff]
  %v48 = vld [vmem:[%s0 + $0xf8] sm:$0xff]
  %v49 = vld [vmem:[%s0 + $0x100] sm:$0xff]
  %v50 = vld [vmem:[%s0 + $0x108] sm:$0xff]
  %v51 = vld [vmem:[%s0 + $0x110] sm:$0xff]
  %v52 = vld [vmem:[%s0 + $0x118] sm:$0xff]
  %v53 = vld [vmem:[%s0 + $0x120] sm:$0xff]
  %v54 = vld [vmem:[%s0 + $0x128] sm:$0xff]
  %v55 = vld [vmem:[%s0 + $0x130] sm:$0xff]
  %v56 = vld [vmem:[%s0 + $0x138] sm:$0xff]
  %v57 = vld [vmem:[%s0 + $0x140] sm:$0xff]
  %v58 = vld [vmem:[%s0 + $0x148] sm:$0xff]
  %v59 = vld [vmem:[%s0 + $0x150] sm:$0xff]
  %v60 = vld [vmem:[%s0 + $0x158] sm:$0xff]
  %v61 = vld [vmem:[%s0 + $0x160] sm:$0xff]
  %v62 = vld [vmem:[%s0 + $0x168] sm:$0xff]
  %v63 = vld [vmem:[%s0 + $0x170] sm:$0xff]
  %v64 = vld [vmem:[%s0 + $0x178] sm:$0xff]
  %v65 = vld [vmem:[%s0 + $0x180] sm:$0xff]
  %v66 = vld [vmem:[%s0 + $0x188] sm:$0xff]
  %v67 = vld [vmem:[%s0 + $0x190] sm:$0xff]
  %v68 = vld [vmem:[%s0 + $0x198] sm:$0xff]
  %v69 = vld [vmem:[%s0 + $0x1a0] sm:$0xff]
  %v70 = vld [vmem:[%s0 + $0x1a8] sm:$0xff]
  %v71 = vld [vmem:[%s0 + $0x1b0] sm:$0xff]
  %v72 = vld [vmem:[%s0 + $0x1b8] sm:$0xff]
  %v73 = vld [vmem:[%s0 + $0x1c0] sm:$0xff]
  %v74 = vld [vmem:[%s0 + $0x1c8] sm:$0xff]
  %v75 = vld [vmem:[%s0 + $0x1d0] sm:$0xff]
  %v76 = vld [vmem:[%s0 + $0x1d8] sm:$0xff]
  %v77 = vld [vmem:[%s0 + $0x1e0] sm:$0xff]
  %v78 = vld [vmem:[%s0 + $0x1e8] sm:$0xff]
  %v79 = vld [vmem:[%s0 + $0x1f0] sm:$0xff]
  %v80 = vld [vmem:[%s0 + $0x1f8] sm:$0xff]
  %v81 = vpack.c.bf16 %v18, %v17
  %v82 = vpack.c.bf16 %v20, %v19
  %v83 = vpack.c.bf16 %v22, %v21
  %v84 = vpack.c.bf16 %v24, %v23
  %v85 = vpack.c.bf16 %v26, %v25
  %v86 = vpack.c.bf16 %v28, %v27
  %v87 = vpack.c.bf16 %v30, %v29
  %v88 = vpack.c.bf16 %v32, %v31
  %v89 = vpack.c.bf16 %v34, %v33
  %v90 = vpack.c.bf16 %v36, %v35
  %v91 = vpack.c.bf16 %v38, %v37
  %v92 = vpack.c.bf16 %v40, %v39
  %v93 = vpack.c.bf16 %v42, %v41
  %v94 = vpack.c.bf16 %v44, %v43
  %v95 = vpack.c.bf16 %v46, %v45
  %v96 = vpack.c.bf16 %v48, %v47
  %v97 = vpack.c.bf16 %v50, %v49
  %v98 = vpack.c.bf16 %v52, %v51
  %v99 = vpack.c.bf16 %v54, %v53
  %v100 = vpack.c.bf16 %v56, %v55
  %v101 = vpack.c.bf16 %v58, %v57
  %v102 = vpack.c.bf16 %v60, %v59
  %v103 = vpack.c.bf16 %v62, %v61
  %v104 = vpack.c.bf16 %v64, %v63
  %v105 = vpack.c.bf16 %v66, %v65
  %v106 = vpack.c.bf16 %v68, %v67
  %v107 = vpack.c.bf16 %v70, %v69
  %v108 = vpack.c.bf16 %v72, %v71
  %v109 = vpack.c.bf16 %v74, %v73
  %v110 = vpack.c.bf16 %v76, %v75
  %v111 = vpack.c.bf16 %v78, %v77
  %v112 = vpack.c.bf16 %v80, %v79
  %v113 = vld [vmem:[%s2] sm:$0xf]
  %v114 = vld [vmem:[%s2 + $0x4] sm:$0xf]
  %v115 = vperm.slane %v16, 0
  %v118 = vunpack.c.l.b16 %v113
  %v119 = vunpack.c.l.b16 %v114
  %v120 = vpack.c.b16 %v119, %v118
  %vm122 = vcmask 130048
  %v124 = vsel %vm122, %v81, 0
  %v127 = vsel %vm122, %v82, 0
  %v130 = vsel %vm122, %v83, 0
  %v133 = vsel %vm122, %v84, 0
  %v136 = vsel %vm122, %v85, 0
  %v139 = vsel %vm122, %v86, 0
  %v142 = vsel %vm122, %v87, 0
  %v145 = vsel %vm122, %v88, 0
  %v148 = vsel %vm122, %v89, 0
  %v151 = vsel %vm122, %v90, 0
  %v154 = vsel %vm122, %v91, 0
  %v157 = vsel %vm122, %v92, 0
  %v160 = vsel %vm122, %v93, 0
  %v163 = vsel %vm122, %v94, 0
  %v166 = vsel %vm122, %v95, 0
  %v169 = vsel %vm122, %v96, 0
  %v172 = vsel %vm122, %v97, 0
  %v175 = vsel %vm122, %v98, 0
  %v178 = vsel %vm122, %v99, 0
  %v181 = vsel %vm122, %v100, 0
  %v184 = vsel %vm122, %v101, 0
  %v187 = vsel %vm122, %v102, 0
  %v190 = vsel %vm122, %v103, 0
  %v193 = vsel %vm122, %v104, 0
  %v196 = vsel %vm122, %v105, 0
  %v199 = vsel %vm122, %v106, 0
  %v202 = vsel %vm122, %v107, 0
  %v205 = vsel %vm122, %v108, 0
  %v208 = vsel %vm122, %v109, 0
  %v211 = vsel %vm122, %v110, 0
  %v214 = vsel %vm122, %v111, 0
  %v217 = vsel %vm122, %v112, 0
  %219 = vmatpush.bf16.msra.mxu0 0
  %220 = vmatpush.bf16.msra.mxu0 0
  %221 = vmatpush.bf16.msra.mxu0 0
  %222 = vmatpush.bf16.msra.mxu0 0
  %223 = vmatpush.bf16.msra.mxu0 0
  %224 = vmatpush.bf16.msra.mxu0 0
  %225 = vmatpush.bf16.msra.mxu0 0
  %226 = vmatpush.bf16.msra.mxu0 %v120
  %227 = vmatmul.bf16.gmra.mxu0 %v124
  %v228 = vpop.f32.mrf.mxu0
  %v229 = vadd.f32 %v115, %v228
  %v230 = vpop.f32.mrf.mxu0
  %v231 = vadd.f32 %v115, %v230
  %232 = vmatmul.bf16.gmra.mxu0 %v127
  %v233 = vpop.f32.mrf.mxu0
  %v234 = vadd.f32 %v115, %v233
  %v235 = vpop.f32.mrf.mxu0
  %v236 = vadd.f32 %v115, %v235
  %237 = vmatmul.bf16.gmra.mxu0 %v130
  %v238 = vpop.f32.mrf.mxu0
  %v239 = vadd.f32 %v115, %v238
  %v240 = vpop.f32.mrf.mxu0
  %v241 = vadd.f32 %v115, %v240
  %242 = vmatmul.bf16.gmra.mxu0 %v133
  %v243 = vpop.f32.mrf.mxu0
  %v244 = vadd.f32 %v115, %v243
  %v245 = vpop.f32.mrf.mxu0
  %v246 = vadd.f32 %v115, %v245
  %247 = vmatmul.bf16.gmra.mxu0 %v136
  %v248 = vpop.f32.mrf.mxu0
  %v249 = vadd.f32 %v115, %v248
  %v250 = vpop.f32.mrf.mxu0
  %v251 = vadd.f32 %v115, %v250
  %252 = vmatmul.bf16.gmra.mxu0 %v139
  %v253 = vpop.f32.mrf.mxu0
  %v254 = vadd.f32 %v115, %v253
  %v255 = vpop.f32.mrf.mxu0
  %v256 = vadd.f32 %v115, %v255
  %257 = vmatmul.bf16.gmra.mxu0 %v142
  %v258 = vpop.f32.mrf.mxu0
  %v259 = vadd.f32 %v115, %v258
  %v260 = vpop.f32.mrf.mxu0
  %v261 = vadd.f32 %v115, %v260
  %262 = vmatmul.bf16.gmra.mxu0 %v145
  %v263 = vpop.f32.mrf.mxu0
  %v264 = vadd.f32 %v115, %v263
  %v265 = vpop.f32.mrf.mxu0
  %v266 = vadd.f32 %v115, %v265
  %267 = vmatmul.bf16.gmra.mxu0 %v148
  %v268 = vpop.f32.mrf.mxu0
  %v269 = vadd.f32 %v115, %v268
  %v270 = vpop.f32.mrf.mxu0
  %v271 = vadd.f32 %v115, %v270
  %272 = vmatmul.bf16.gmra.mxu0 %v151
  %v273 = vpop.f32.mrf.mxu0
  %v274 = vadd.f32 %v115, %v273
  %v275 = vpop.f32.mrf.mxu0
  %v276 = vadd.f32 %v115, %v275
  %277 = vmatmul.bf16.gmra.mxu0 %v154
  %v278 = vpop.f32.mrf.mxu0
  %v279 = vadd.f32 %v115, %v278
  %v280 = vpop.f32.mrf.mxu0
  %v281 = vadd.f32 %v115, %v280
  %282 = vmatmul.bf16.gmra.mxu0 %v157
  %v283 = vpop.f32.mrf.mxu0
  %v284 = vadd.f32 %v115, %v283
  %v285 = vpop.f32.mrf.mxu0
  %v286 = vadd.f32 %v115, %v285
  %287 = vmatmul.bf16.gmra.mxu0 %v160
  %v288 = vpop.f32.mrf.mxu0
  %v289 = vadd.f32 %v115, %v288
  %v290 = vpop.f32.mrf.mxu0
  %v291 = vadd.f32 %v115, %v290
  %292 = vmatmul.bf16.gmra.mxu0 %v163
  %v293 = vpop.f32.mrf.mxu0
  %v294 = vadd.f32 %v115, %v293
  %v295 = vpop.f32.mrf.mxu0
  %v296 = vadd.f32 %v115, %v295
  %297 = vmatmul.bf16.gmra.mxu0 %v166
  %v298 = vpop.f32.mrf.mxu0
  %v299 = vadd.f32 %v115, %v298
  %v300 = vpop.f32.mrf.mxu0
  %v301 = vadd.f32 %v115, %v300
  %302 = vmatmul.bf16.gmra.mxu0 %v169
  %v303 = vpop.f32.mrf.mxu0
  %v304 = vadd.f32 %v115, %v303
  %v305 = vpop.f32.mrf.mxu0
  %v306 = vadd.f32 %v115, %v305
  %307 = vmatmul.bf16.gmra.mxu0 %v172
  %v308 = vpop.f32.mrf.mxu0
  %v309 = vadd.f32 %v115, %v308
  %v310 = vpop.f32.mrf.mxu0
  %v311 = vadd.f32 %v115, %v310
  %312 = vmatmul.bf16.gmra.mxu0 %v175
  %v313 = vpop.f32.mrf.mxu0
  %v314 = vadd.f32 %v115, %v313
  %v315 = vpop.f32.mrf.mxu0
  %v316 = vadd.f32 %v115, %v315
  %317 = vmatmul.bf16.gmra.mxu0 %v178
  %v318 = vpop.f32.mrf.mxu0
  %v319 = vadd.f32 %v115, %v318
  %v320 = vpop.f32.mrf.mxu0
  %v321 = vadd.f32 %v115, %v320
  %322 = vmatmul.bf16.gmra.mxu0 %v181
  %v323 = vpop.f32.mrf.mxu0
  %v324 = vadd.f32 %v115, %v323
  %v325 = vpop.f32.mrf.mxu0
  %v326 = vadd.f32 %v115, %v325
  %327 = vmatmul.bf16.gmra.mxu0 %v184
  %v328 = vpop.f32.mrf.mxu0
  %v329 = vadd.f32 %v115, %v328
  %v330 = vpop.f32.mrf.mxu0
  %v331 = vadd.f32 %v115, %v330
  %332 = vmatmul.bf16.gmra.mxu0 %v187
  %v333 = vpop.f32.mrf.mxu0
  %v334 = vadd.f32 %v115, %v333
  %v335 = vpop.f32.mrf.mxu0
  %v336 = vadd.f32 %v115, %v335
  %337 = vmatmul.bf16.gmra.mxu0 %v190
  %v338 = vpop.f32.mrf.mxu0
  %v339 = vadd.f32 %v115, %v338
  %v340 = vpop.f32.mrf.mxu0
  %v341 = vadd.f32 %v115, %v340
  %342 = vmatmul.bf16.gmra.mxu0 %v193
  %v343 = vpop.f32.mrf.mxu0
  %v344 = vadd.f32 %v115, %v343
  %v345 = vpop.f32.mrf.mxu0
  %v346 = vadd.f32 %v115, %v345
  %347 = vmatmul.bf16.gmra.mxu0 %v196
  %v348 = vpop.f32.mrf.mxu0
  %v349 = vadd.f32 %v115, %v348
  %v350 = vpop.f32.mrf.mxu0
  %v351 = vadd.f32 %v115, %v350
  %352 = vmatmul.bf16.gmra.mxu0 %v199
  %v353 = vpop.f32.mrf.mxu0
  %v354 = vadd.f32 %v115, %v353
  %v355 = vpop.f32.mrf.mxu0
  %v356 = vadd.f32 %v115, %v355
  %357 = vmatmul.bf16.gmra.mxu0 %v202
  %v358 = vpop.f32.mrf.mxu0
  %v359 = vadd.f32 %v115, %v358
  %v360 = vpop.f32.mrf.mxu0
  %v361 = vadd.f32 %v115, %v360
  %362 = vmatmul.bf16.gmra.mxu0 %v205
  %v363 = vpop.f32.mrf.mxu0
  %v364 = vadd.f32 %v115, %v363
  %v365 = vpop.f32.mrf.mxu0
  %v366 = vadd.f32 %v115, %v365
  %367 = vmatmul.bf16.gmra.mxu0 %v208
  %v368 = vpop.f32.mrf.mxu0
  %v369 = vadd.f32 %v115, %v368
  %v370 = vpop.f32.mrf.mxu0
  %v371 = vadd.f32 %v115, %v370
  %372 = vmatmul.bf16.gmra.mxu0 %v211
  %v373 = vpop.f32.mrf.mxu0
  %v374 = vadd.f32 %v115, %v373
  %v375 = vpop.f32.mrf.mxu0
  %v376 = vadd.f32 %v115, %v375
  %377 = vmatmul.bf16.gmra.mxu0 %v214
  %v378 = vpop.f32.mrf.mxu0
  %v379 = vadd.f32 %v115, %v378
  %v380 = vpop.f32.mrf.mxu0
  %v381 = vadd.f32 %v115, %v380
  %382 = vmatmul.bf16.gmra.mxu0 %v217
  %v383 = vpop.f32.mrf.mxu0
  %v384 = vadd.f32 %v115, %v383
  %v385 = vpop.f32.mrf.mxu0
  %v386 = vadd.f32 %v115, %v385
  %387 = vdwg.mxu0
  %v388 = vmax.f32 %v229, 0.0
  %v389 = vmax.f32 %v231, 0.0
  %v390 = vmax.f32 %v234, 0.0
  %v391 = vmax.f32 %v236, 0.0
  %v392 = vmax.f32 %v239, 0.0
  %v393 = vmax.f32 %v241, 0.0
  %v394 = vmax.f32 %v244, 0.0
  %v395 = vmax.f32 %v246, 0.0
  %v396 = vmax.f32 %v249, 0.0
  %v397 = vmax.f32 %v251, 0.0
  %v398 = vmax.f32 %v254, 0.0
  %v399 = vmax.f32 %v256, 0.0
  %v400 = vmax.f32 %v259, 0.0
  %v401 = vmax.f32 %v261, 0.0
  %v402 = vmax.f32 %v264, 0.0
  %v403 = vmax.f32 %v266, 0.0
  %v404 = vmax.f32 %v269, 0.0
  %v405 = vmax.f32 %v271, 0.0
  %v406 = vmax.f32 %v274, 0.0
  %v407 = vmax.f32 %v276, 0.0
  %v408 = vmax.f32 %v279, 0.0
  %v409 = vmax.f32 %v281, 0.0
  %v410 = vmax.f32 %v284, 0.0
  %v411 = vmax.f32 %v286, 0.0
  %v412 = vmax.f32 %v289, 0.0
  %v413 = vmax.f32 %v291, 0.0
  %v414 = vmax.f32 %v294, 0.0
  %v415 = vmax.f32 %v296, 0.0
  %v416 = vmax.f32 %v299, 0.0
  %v417 = vmax.f32 %v301, 0.0
  %v418 = vmax.f32 %v304, 0.0
  %v419 = vmax.f32 %v306, 0.0
  %v420 = vmax.f32 %v309, 0.0
  %v421 = vmax.f32 %v311, 0.0
  %v422 = vmax.f32 %v314, 0.0
  %v423 = vmax.f32 %v316, 0.0
  %v424 = vmax.f32 %v319, 0.0
  %v425 = vmax.f32 %v321, 0.0
  %v426 = vmax.f32 %v324, 0.0
  %v427 = vmax.f32 %v326, 0.0
  %v428 = vmax.f32 %v329, 0.0
  %v429 = vmax.f32 %v331, 0.0
  %v430 = vmax.f32 %v334, 0.0
  %v431 = vmax.f32 %v336, 0.0
  %v432 = vmax.f32 %v339, 0.0
  %v433 = vmax.f32 %v341, 0.0
  %v434 = vmax.f32 %v344, 0.0
  %v435 = vmax.f32 %v346, 0.0
  %v436 = vmax.f32 %v349, 0.0
  %v437 = vmax.f32 %v351, 0.0
  %v438 = vmax.f32 %v354, 0.0
  %v439 = vmax.f32 %v356, 0.0
  %v440 = vmax.f32 %v359, 0.0
  %v441 = vmax.f32 %v361, 0.0
  %v442 = vmax.f32 %v364, 0.0
  %v443 = vmax.f32 %v366, 0.0
  %v444 = vmax.f32 %v369, 0.0
  %v445 = vmax.f32 %v371, 0.0
  %v446 = vmax.f32 %v374, 0.0
  %v447 = vmax.f32 %v376, 0.0
  %v448 = vmax.f32 %v379, 0.0
  %v449 = vmax.f32 %v381, 0.0
  %v450 = vmax.f32 %v384, 0.0
  %v451 = vmax.f32 %v386, 0.0
  %v452 = vld [vmem:[%s2 + $0x8] sm:$0xf]
  %v453 = vld [vmem:[%s2 + $0xc] sm:$0xf]
  %v454 = vld [vmem:[%s2 + $0x10] sm:$0xf]
  %v455 = vld [vmem:[%s2 + $0x14] sm:$0xf]
  %v456 = vld [vmem:[%s2 + $0x18] sm:$0xf]
  %v457 = vld [vmem:[%s2 + $0x1c] sm:$0xf]
  %v458 = vld [vmem:[%s2 + $0x20] sm:$0xf]
  %v459 = vld [vmem:[%s2 + $0x24] sm:$0xf]
  %v460 = vld [vmem:[%s2 + $0x28] sm:$0xf]
  %v461 = vld [vmem:[%s2 + $0x2c] sm:$0xf]
  %v462 = vld [vmem:[%s2 + $0x30] sm:$0xf]
  %v463 = vld [vmem:[%s2 + $0x34] sm:$0xf]
  %v464 = vld [vmem:[%s2 + $0x38] sm:$0xf]
  %v465 = vld [vmem:[%s2 + $0x3c] sm:$0xf]
  %v466 = vld [vmem:[%s2 + $0x40] sm:$0xf]
  %v467 = vld [vmem:[%s2 + $0x44] sm:$0xf]
  %v468 = vpack.c.bf16 %v389, %v388
  %v469 = vpack.c.bf16 %v391, %v390
  %v470 = vpack.c.bf16 %v393, %v392
  %v471 = vpack.c.bf16 %v395, %v394
  %v472 = vpack.c.bf16 %v397, %v396
  %v473 = vpack.c.bf16 %v399, %v398
  %v474 = vpack.c.bf16 %v401, %v400
  %v475 = vpack.c.bf16 %v403, %v402
  %v476 = vpack.c.bf16 %v405, %v404
  %v477 = vpack.c.bf16 %v407, %v406
  %v478 = vpack.c.bf16 %v409, %v408
  %v479 = vpack.c.bf16 %v411, %v410
  %v480 = vpack.c.bf16 %v413, %v412
  %v481 = vpack.c.bf16 %v415, %v414
  %v482 = vpack.c.bf16 %v417, %v416
  %v483 = vpack.c.bf16 %v419, %v418
  %v484 = vpack.c.bf16 %v421, %v420
  %v485 = vpack.c.bf16 %v423, %v422
  %v486 = vpack.c.bf16 %v425, %v424
  %v487 = vpack.c.bf16 %v427, %v426
  %v488 = vpack.c.bf16 %v429, %v428
  %v489 = vpack.c.bf16 %v431, %v430
  %v490 = vpack.c.bf16 %v433, %v432
  %v491 = vpack.c.bf16 %v435, %v434
  %v492 = vpack.c.bf16 %v437, %v436
  %v493 = vpack.c.bf16 %v439, %v438
  %v494 = vpack.c.bf16 %v441, %v440
  %v495 = vpack.c.bf16 %v443, %v442
  %v496 = vpack.c.bf16 %v445, %v444
  %v497 = vpack.c.bf16 %v447, %v446
  %v498 = vpack.c.bf16 %v449, %v448
  %v499 = vpack.c.bf16 %v451, %v450
  %v500 = vperm.slane %v16, 1
  %v517 = vunpack.c.l.b16 %v452
  %v518 = vunpack.c.l.b16 %v453
  %v519 = vunpack.c.l.b16 %v454
  %v520 = vunpack.c.l.b16 %v455
  %v521 = vunpack.c.l.b16 %v456
  %v522 = vunpack.c.l.b16 %v457
  %v523 = vunpack.c.l.b16 %v458
  %v524 = vunpack.c.l.b16 %v459
  %v525 = vunpack.c.l.b16 %v460
  %v526 = vunpack.c.l.b16 %v461
  %v527 = vunpack.c.l.b16 %v462
  %v528 = vunpack.c.l.b16 %v463
  %v529 = vunpack.c.l.b16 %v464
  %v530 = vunpack.c.l.b16 %v465
  %v531 = vunpack.c.l.b16 %v466
  %v532 = vunpack.c.l.b16 %v467
  %v533 = vpack.c.b16 %v518, %v517
  %v534 = vpack.c.b16 %v520, %v519
  %v535 = vpack.c.b16 %v522, %v521
  %v536 = vpack.c.b16 %v524, %v523
  %v537 = vpack.c.b16 %v526, %v525
  %v538 = vpack.c.b16 %v528, %v527
  %v539 = vpack.c.b16 %v530, %v529
  %v540 = vpack.c.b16 %v532, %v531
  %549 = vmatpush.bf16.msra.mxu0 %v540
  %550 = vmatpush.bf16.msra.mxu0 %v539
  %551 = vmatpush.bf16.msra.mxu0 %v538
  %552 = vmatpush.bf16.msra.mxu0 %v537
  %553 = vmatpush.bf16.msra.mxu0 %v536
  %554 = vmatpush.bf16.msra.mxu0 %v535
  %555 = vmatpush.bf16.msra.mxu0 %v534
  %556 = vmatpush.bf16.msra.mxu0 %v533
  %557 = vmatmul.bf16.gmra.mxu0 %v468
  %v558 = vpop.f32.mrf.mxu0
  %v559 = vadd.f32 %v500, %v558
  %v560 = vpop.f32.mrf.mxu0
  %v561 = vadd.f32 %v500, %v560
  %562 = vmatmul.bf16.gmra.mxu0 %v469
  %v563 = vpop.f32.mrf.mxu0
  %v564 = vadd.f32 %v500, %v563
  %v565 = vpop.f32.mrf.mxu0
  %v566 = vadd.f32 %v500, %v565
  %567 = vmatmul.bf16.gmra.mxu0 %v470
  %v568 = vpop.f32.mrf.mxu0
  %v569 = vadd.f32 %v500, %v568
  %v570 = vpop.f32.mrf.mxu0
  %v571 = vadd.f32 %v500, %v570
  %572 = vmatmul.bf16.gmra.mxu0 %v471
  %v573 = vpop.f32.mrf.mxu0
  %v574 = vadd.f32 %v500, %v573
  %v575 = vpop.f32.mrf.mxu0
  %v576 = vadd.f32 %v500, %v575
  %577 = vmatmul.bf16.gmra.mxu0 %v472
  %v578 = vpop.f32.mrf.mxu0
  %v579 = vadd.f32 %v500, %v578
  %v580 = vpop.f32.mrf.mxu0
  %v581 = vadd.f32 %v500, %v580
  %582 = vmatmul.bf16.gmra.mxu0 %v473
  %v583 = vpop.f32.mrf.mxu0
  %v584 = vadd.f32 %v500, %v583
  %v585 = vpop.f32.mrf.mxu0
  %v586 = vadd.f32 %v500, %v585
  %587 = vmatmul.bf16.gmra.mxu0 %v474
  %v588 = vpop.f32.mrf.mxu0
  %v589 = vadd.f32 %v500, %v588
  %v590 = vpop.f32.mrf.mxu0
  %v591 = vadd.f32 %v500, %v590
  %592 = vmatmul.bf16.gmra.mxu0 %v475
  %v593 = vpop.f32.mrf.mxu0
  %v594 = vadd.f32 %v500, %v593
  %v595 = vpop.f32.mrf.mxu0
  %v596 = vadd.f32 %v500, %v595
  %597 = vmatmul.bf16.gmra.mxu0 %v476
  %v598 = vpop.f32.mrf.mxu0
  %v599 = vadd.f32 %v500, %v598
  %v600 = vpop.f32.mrf.mxu0
  %v601 = vadd.f32 %v500, %v600
  %602 = vmatmul.bf16.gmra.mxu0 %v477
  %v603 = vpop.f32.mrf.mxu0
  %v604 = vadd.f32 %v500, %v603
  %v605 = vpop.f32.mrf.mxu0
  %v606 = vadd.f32 %v500, %v605
  %607 = vmatmul.bf16.gmra.mxu0 %v478
  %v608 = vpop.f32.mrf.mxu0
  %v609 = vadd.f32 %v500, %v608
  %v610 = vpop.f32.mrf.mxu0
  %v611 = vadd.f32 %v500, %v610
  %612 = vmatmul.bf16.gmra.mxu0 %v479
  %v613 = vpop.f32.mrf.mxu0
  %v614 = vadd.f32 %v500, %v613
  %v615 = vpop.f32.mrf.mxu0
  %v616 = vadd.f32 %v500, %v615
  %617 = vmatmul.bf16.gmra.mxu0 %v480
  %v618 = vpop.f32.mrf.mxu0
  %v619 = vadd.f32 %v500, %v618
  %v620 = vpop.f32.mrf.mxu0
  %v621 = vadd.f32 %v500, %v620
  %622 = vmatmul.bf16.gmra.mxu0 %v481
  %v623 = vpop.f32.mrf.mxu0
  %v624 = vadd.f32 %v500, %v623
  %v625 = vpop.f32.mrf.mxu0
  %v626 = vadd.f32 %v500, %v625
  %627 = vmatmul.bf16.gmra.mxu0 %v482
  %v628 = vpop.f32.mrf.mxu0
  %v629 = vadd.f32 %v500, %v628
  %v630 = vpop.f32.mrf.mxu0
  %v631 = vadd.f32 %v500, %v630
  %632 = vmatmul.bf16.gmra.mxu0 %v483
  %v633 = vpop.f32.mrf.mxu0
  %v634 = vadd.f32 %v500, %v633
  %v635 = vpop.f32.mrf.mxu0
  %v636 = vadd.f32 %v500, %v635
  %637 = vmatmul.bf16.gmra.mxu0 %v484
  %v638 = vpop.f32.mrf.mxu0
  %v639 = vadd.f32 %v500, %v638
  %v640 = vpop.f32.mrf.mxu0
  %v641 = vadd.f32 %v500, %v640
  %642 = vmatmul.bf16.gmra.mxu0 %v485
  %v643 = vpop.f32.mrf.mxu0
  %v644 = vadd.f32 %v500, %v643
  %v645 = vpop.f32.mrf.mxu0
  %v646 = vadd.f32 %v500, %v645
  %647 = vmatmul.bf16.gmra.mxu0 %v486
  %v648 = vpop.f32.mrf.mxu0
  %v649 = vadd.f32 %v500, %v648
  %v650 = vpop.f32.mrf.mxu0
  %v651 = vadd.f32 %v500, %v650
  %652 = vmatmul.bf16.gmra.mxu0 %v487
  %v653 = vpop.f32.mrf.mxu0
  %v654 = vadd.f32 %v500, %v653
  %v655 = vpop.f32.mrf.mxu0
  %v656 = vadd.f32 %v500, %v655
  %657 = vmatmul.bf16.gmra.mxu0 %v488
  %v658 = vpop.f32.mrf.mxu0
  %v659 = vadd.f32 %v500, %v658
  %v660 = vpop.f32.mrf.mxu0
  %v661 = vadd.f32 %v500, %v660
  %662 = vmatmul.bf16.gmra.mxu0 %v489
  %v663 = vpop.f32.mrf.mxu0
  %v664 = vadd.f32 %v500, %v663
  %v665 = vpop.f32.mrf.mxu0
  %v666 = vadd.f32 %v500, %v665
  %667 = vmatmul.bf16.gmra.mxu0 %v490
  %v668 = vpop.f32.mrf.mxu0
  %v669 = vadd.f32 %v500, %v668
  %v670 = vpop.f32.mrf.mxu0
  %v671 = vadd.f32 %v500, %v670
  %672 = vmatmul.bf16.gmra.mxu0 %v491
  %v673 = vpop.f32.mrf.mxu0
  %v674 = vadd.f32 %v500, %v673
  %v675 = vpop.f32.mrf.mxu0
  %v676 = vadd.f32 %v500, %v675
  %677 = vmatmul.bf16.gmra.mxu0 %v492
  %v678 = vpop.f32.mrf.mxu0
  %v679 = vadd.f32 %v500, %v678
  %v680 = vpop.f32.mrf.mxu0
  %v681 = vadd.f32 %v500, %v680
  %682 = vmatmul.bf16.gmra.mxu0 %v493
  %v683 = vpop.f32.mrf.mxu0
  %v684 = vadd.f32 %v500, %v683
  %v685 = vpop.f32.mrf.mxu0
  %v686 = vadd.f32 %v500, %v685
  %687 = vmatmul.bf16.gmra.mxu0 %v494
  %v688 = vpop.f32.mrf.mxu0
  %v689 = vadd.f32 %v500, %v688
  %v690 = vpop.f32.mrf.mxu0
  %v691 = vadd.f32 %v500, %v690
  %692 = vmatmul.bf16.gmra.mxu0 %v495
  %v693 = vpop.f32.mrf.mxu0
  %v694 = vadd.f32 %v500, %v693
  %v695 = vpop.f32.mrf.mxu0
  %v696 = vadd.f32 %v500, %v695
  %697 = vmatmul.bf16.gmra.mxu0 %v496
  %v698 = vpop.f32.mrf.mxu0
  %v699 = vadd.f32 %v500, %v698
  %v700 = vpop.f32.mrf.mxu0
  %v701 = vadd.f32 %v500, %v700
  %702 = vmatmul.bf16.gmra.mxu0 %v497
  %v703 = vpop.f32.mrf.mxu0
  %v704 = vadd.f32 %v500, %v703
  %v705 = vpop.f32.mrf.mxu0
  %v706 = vadd.f32 %v500, %v705
  %707 = vmatmul.bf16.gmra.mxu0 %v498
  %v708 = vpop.f32.mrf.mxu0
  %v709 = vadd.f32 %v500, %v708
  %v710 = vpop.f32.mrf.mxu0
  %v711 = vadd.f32 %v500, %v710
  %712 = vmatmul.bf16.gmra.mxu0 %v499
  %v713 = vpop.f32.mrf.mxu0
  %v714 = vadd.f32 %v500, %v713
  %v715 = vpop.f32.mrf.mxu0
  %v716 = vadd.f32 %v500, %v715
  %717 = vdwg.mxu0
  %v718 = vmax.f32 %v559, 0.0
  %v719 = vmax.f32 %v561, 0.0
  %v720 = vmax.f32 %v564, 0.0
  %v721 = vmax.f32 %v566, 0.0
  %v722 = vmax.f32 %v569, 0.0
  %v723 = vmax.f32 %v571, 0.0
  %v724 = vmax.f32 %v574, 0.0
  %v725 = vmax.f32 %v576, 0.0
  %v726 = vmax.f32 %v579, 0.0
  %v727 = vmax.f32 %v581, 0.0
  %v728 = vmax.f32 %v584, 0.0
  %v729 = vmax.f32 %v586, 0.0
  %v730 = vmax.f32 %v589, 0.0
  %v731 = vmax.f32 %v591, 0.0
  %v732 = vmax.f32 %v594, 0.0
  %v733 = vmax.f32 %v596, 0.0
  %v734 = vmax.f32 %v599, 0.0
  %v735 = vmax.f32 %v601, 0.0
  %v736 = vmax.f32 %v604, 0.0
  %v737 = vmax.f32 %v606, 0.0
  %v738 = vmax.f32 %v609, 0.0
  %v739 = vmax.f32 %v611, 0.0
  %v740 = vmax.f32 %v614, 0.0
  %v741 = vmax.f32 %v616, 0.0
  %v742 = vmax.f32 %v619, 0.0
  %v743 = vmax.f32 %v621, 0.0
  %v744 = vmax.f32 %v624, 0.0
  %v745 = vmax.f32 %v626, 0.0
  %v746 = vmax.f32 %v629, 0.0
  %v747 = vmax.f32 %v631, 0.0
  %v748 = vmax.f32 %v634, 0.0
  %v749 = vmax.f32 %v636, 0.0
  %v750 = vmax.f32 %v639, 0.0
  %v751 = vmax.f32 %v641, 0.0
  %v752 = vmax.f32 %v644, 0.0
  %v753 = vmax.f32 %v646, 0.0
  %v754 = vmax.f32 %v649, 0.0
  %v755 = vmax.f32 %v651, 0.0
  %v756 = vmax.f32 %v654, 0.0
  %v757 = vmax.f32 %v656, 0.0
  %v758 = vmax.f32 %v659, 0.0
  %v759 = vmax.f32 %v661, 0.0
  %v760 = vmax.f32 %v664, 0.0
  %v761 = vmax.f32 %v666, 0.0
  %v762 = vmax.f32 %v669, 0.0
  %v763 = vmax.f32 %v671, 0.0
  %v764 = vmax.f32 %v674, 0.0
  %v765 = vmax.f32 %v676, 0.0
  %v766 = vmax.f32 %v679, 0.0
  %v767 = vmax.f32 %v681, 0.0
  %v768 = vmax.f32 %v684, 0.0
  %v769 = vmax.f32 %v686, 0.0
  %v770 = vmax.f32 %v689, 0.0
  %v771 = vmax.f32 %v691, 0.0
  %v772 = vmax.f32 %v694, 0.0
  %v773 = vmax.f32 %v696, 0.0
  %v774 = vmax.f32 %v699, 0.0
  %v775 = vmax.f32 %v701, 0.0
  %v776 = vmax.f32 %v704, 0.0
  %v777 = vmax.f32 %v706, 0.0
  %v778 = vmax.f32 %v709, 0.0
  %v779 = vmax.f32 %v711, 0.0
  %v780 = vmax.f32 %v714, 0.0
  %v781 = vmax.f32 %v716, 0.0
  %v782 = vld [vmem:[%s2 + $0x48] sm:$0xf]
  %v783 = vld [vmem:[%s2 + $0x4c] sm:$0xf]
  %v784 = vld [vmem:[%s2 + $0x50] sm:$0xf]
  %v785 = vld [vmem:[%s2 + $0x54] sm:$0xf]
  %v786 = vld [vmem:[%s2 + $0x58] sm:$0xf]
  %v787 = vld [vmem:[%s2 + $0x5c] sm:$0xf]
  %v788 = vld [vmem:[%s2 + $0x60] sm:$0xf]
  %v789 = vld [vmem:[%s2 + $0x64] sm:$0xf]
  %v790 = vld [vmem:[%s2 + $0x68] sm:$0xf]
  %v791 = vld [vmem:[%s2 + $0x6c] sm:$0xf]
  %v792 = vld [vmem:[%s2 + $0x70] sm:$0xf]
  %v793 = vld [vmem:[%s2 + $0x74] sm:$0xf]
  %v794 = vld [vmem:[%s2 + $0x78] sm:$0xf]
  %v795 = vld [vmem:[%s2 + $0x7c] sm:$0xf]
  %v796 = vld [vmem:[%s2 + $0x80] sm:$0xf]
  %v797 = vld [vmem:[%s2 + $0x84] sm:$0xf]
  %v798 = vpack.c.bf16 %v719, %v718
  %v799 = vpack.c.bf16 %v721, %v720
  %v800 = vpack.c.bf16 %v723, %v722
  %v801 = vpack.c.bf16 %v725, %v724
  %v802 = vpack.c.bf16 %v727, %v726
  %v803 = vpack.c.bf16 %v729, %v728
  %v804 = vpack.c.bf16 %v731, %v730
  %v805 = vpack.c.bf16 %v733, %v732
  %v806 = vpack.c.bf16 %v735, %v734
  %v807 = vpack.c.bf16 %v737, %v736
  %v808 = vpack.c.bf16 %v739, %v738
  %v809 = vpack.c.bf16 %v741, %v740
  %v810 = vpack.c.bf16 %v743, %v742
  %v811 = vpack.c.bf16 %v745, %v744
  %v812 = vpack.c.bf16 %v747, %v746
  %v813 = vpack.c.bf16 %v749, %v748
  %v814 = vpack.c.bf16 %v751, %v750
  %v815 = vpack.c.bf16 %v753, %v752
  %v816 = vpack.c.bf16 %v755, %v754
  %v817 = vpack.c.bf16 %v757, %v756
  %v818 = vpack.c.bf16 %v759, %v758
  %v819 = vpack.c.bf16 %v761, %v760
  %v820 = vpack.c.bf16 %v763, %v762
  %v821 = vpack.c.bf16 %v765, %v764
  %v822 = vpack.c.bf16 %v767, %v766
  %v823 = vpack.c.bf16 %v769, %v768
  %v824 = vpack.c.bf16 %v771, %v770
  %v825 = vpack.c.bf16 %v773, %v772
  %v826 = vpack.c.bf16 %v775, %v774
  %v827 = vpack.c.bf16 %v777, %v776
  %v828 = vpack.c.bf16 %v779, %v778
  %v829 = vpack.c.bf16 %v781, %v780
  %v830 = vperm.slane %v16, 2
  %v847 = vunpack.c.l.b16 %v782
  %v848 = vunpack.c.l.b16 %v783
  %v849 = vunpack.c.l.b16 %v784
  %v850 = vunpack.c.l.b16 %v785
  %v851 = vunpack.c.l.b16 %v786
  %v852 = vunpack.c.l.b16 %v787
  %v853 = vunpack.c.l.b16 %v788
  %v854 = vunpack.c.l.b16 %v789
  %v855 = vunpack.c.l.b16 %v790
  %v856 = vunpack.c.l.b16 %v791
  %v857 = vunpack.c.l.b16 %v792
  %v858 = vunpack.c.l.b16 %v793
  %v859 = vunpack.c.l.b16 %v794
  %v860 = vunpack.c.l.b16 %v795
  %v861 = vunpack.c.l.b16 %v796
  %v862 = vunpack.c.l.b16 %v797
  %v863 = vpack.c.b16 %v848, %v847
  %v864 = vpack.c.b16 %v850, %v849
  %v865 = vpack.c.b16 %v852, %v851
  %v866 = vpack.c.b16 %v854, %v853
  %v867 = vpack.c.b16 %v856, %v855
  %v868 = vpack.c.b16 %v858, %v857
  %v869 = vpack.c.b16 %v860, %v859
  %v870 = vpack.c.b16 %v862, %v861
  %879 = vmatpush.bf16.msra.mxu0 %v870
  %880 = vmatpush.bf16.msra.mxu0 %v869
  %881 = vmatpush.bf16.msra.mxu0 %v868
  %882 = vmatpush.bf16.msra.mxu0 %v867
  %883 = vmatpush.bf16.msra.mxu0 %v866
  %884 = vmatpush.bf16.msra.mxu0 %v865
  %885 = vmatpush.bf16.msra.mxu0 %v864
  %886 = vmatpush.bf16.msra.mxu0 %v863
  %887 = vmatmul.bf16.gmra.mxu0 %v798
  %v888 = vpop.f32.mrf.mxu0
  %v889 = vadd.f32 %v830, %v888
  %v890 = vpop.f32.mrf.mxu0
  %v891 = vadd.f32 %v830, %v890
  %892 = vmatmul.bf16.gmra.mxu0 %v799
  %v893 = vpop.f32.mrf.mxu0
  %v894 = vadd.f32 %v830, %v893
  %v895 = vpop.f32.mrf.mxu0
  %v896 = vadd.f32 %v830, %v895
  %897 = vmatmul.bf16.gmra.mxu0 %v800
  %v898 = vpop.f32.mrf.mxu0
  %v899 = vadd.f32 %v830, %v898
  %v900 = vpop.f32.mrf.mxu0
  %v901 = vadd.f32 %v830, %v900
  %902 = vmatmul.bf16.gmra.mxu0 %v801
  %v903 = vpop.f32.mrf.mxu0
  %v904 = vadd.f32 %v830, %v903
  %v905 = vpop.f32.mrf.mxu0
  %v906 = vadd.f32 %v830, %v905
  %907 = vmatmul.bf16.gmra.mxu0 %v802
  %v908 = vpop.f32.mrf.mxu0
  %v909 = vadd.f32 %v830, %v908
  %v910 = vpop.f32.mrf.mxu0
  %v911 = vadd.f32 %v830, %v910
  %912 = vmatmul.bf16.gmra.mxu0 %v803
  %v913 = vpop.f32.mrf.mxu0
  %v914 = vadd.f32 %v830, %v913
  %v915 = vpop.f32.mrf.mxu0
  %v916 = vadd.f32 %v830, %v915
  %917 = vmatmul.bf16.gmra.mxu0 %v804
  %v918 = vpop.f32.mrf.mxu0
  %v919 = vadd.f32 %v830, %v918
  %v920 = vpop.f32.mrf.mxu0
  %v921 = vadd.f32 %v830, %v920
  %922 = vmatmul.bf16.gmra.mxu0 %v805
  %v923 = vpop.f32.mrf.mxu0
  %v924 = vadd.f32 %v830, %v923
  %v925 = vpop.f32.mrf.mxu0
  %v926 = vadd.f32 %v830, %v925
  %927 = vmatmul.bf16.gmra.mxu0 %v806
  %v928 = vpop.f32.mrf.mxu0
  %v929 = vadd.f32 %v830, %v928
  %v930 = vpop.f32.mrf.mxu0
  %v931 = vadd.f32 %v830, %v930
  %932 = vmatmul.bf16.gmra.mxu0 %v807
  %v933 = vpop.f32.mrf.mxu0
  %v934 = vadd.f32 %v830, %v933
  %v935 = vpop.f32.mrf.mxu0
  %v936 = vadd.f32 %v830, %v935
  %937 = vmatmul.bf16.gmra.mxu0 %v808
  %v938 = vpop.f32.mrf.mxu0
  %v939 = vadd.f32 %v830, %v938
  %v940 = vpop.f32.mrf.mxu0
  %v941 = vadd.f32 %v830, %v940
  %942 = vmatmul.bf16.gmra.mxu0 %v809
  %v943 = vpop.f32.mrf.mxu0
  %v944 = vadd.f32 %v830, %v943
  %v945 = vpop.f32.mrf.mxu0
  %v946 = vadd.f32 %v830, %v945
  %947 = vmatmul.bf16.gmra.mxu0 %v810
  %v948 = vpop.f32.mrf.mxu0
  %v949 = vadd.f32 %v830, %v948
  %v950 = vpop.f32.mrf.mxu0
  %v951 = vadd.f32 %v830, %v950
  %952 = vmatmul.bf16.gmra.mxu0 %v811
  %v953 = vpop.f32.mrf.mxu0
  %v954 = vadd.f32 %v830, %v953
  %v955 = vpop.f32.mrf.mxu0
  %v956 = vadd.f32 %v830, %v955
  %957 = vmatmul.bf16.gmra.mxu0 %v812
  %v958 = vpop.f32.mrf.mxu0
  %v959 = vadd.f32 %v830, %v958
  %v960 = vpop.f32.mrf.mxu0
  %v961 = vadd.f32 %v830, %v960
  %962 = vmatmul.bf16.gmra.mxu0 %v813
  %v963 = vpop.f32.mrf.mxu0
  %v964 = vadd.f32 %v830, %v963
  %v965 = vpop.f32.mrf.mxu0
  %v966 = vadd.f32 %v830, %v965
  %967 = vmatmul.bf16.gmra.mxu0 %v814
  %v968 = vpop.f32.mrf.mxu0
  %v969 = vadd.f32 %v830, %v968
  %v970 = vpop.f32.mrf.mxu0
  %v971 = vadd.f32 %v830, %v970
  %972 = vmatmul.bf16.gmra.mxu0 %v815
  %v973 = vpop.f32.mrf.mxu0
  %v974 = vadd.f32 %v830, %v973
  %v975 = vpop.f32.mrf.mxu0
  %v976 = vadd.f32 %v830, %v975
  %977 = vmatmul.bf16.gmra.mxu0 %v816
  %v978 = vpop.f32.mrf.mxu0
  %v979 = vadd.f32 %v830, %v978
  %v980 = vpop.f32.mrf.mxu0
  %v981 = vadd.f32 %v830, %v980
  %982 = vmatmul.bf16.gmra.mxu0 %v817
  %v983 = vpop.f32.mrf.mxu0
  %v984 = vadd.f32 %v830, %v983
  %v985 = vpop.f32.mrf.mxu0
  %v986 = vadd.f32 %v830, %v985
  %987 = vmatmul.bf16.gmra.mxu0 %v818
  %v988 = vpop.f32.mrf.mxu0
  %v989 = vadd.f32 %v830, %v988
  %v990 = vpop.f32.mrf.mxu0
  %v991 = vadd.f32 %v830, %v990
  %992 = vmatmul.bf16.gmra.mxu0 %v819
  %v993 = vpop.f32.mrf.mxu0
  %v994 = vadd.f32 %v830, %v993
  %v995 = vpop.f32.mrf.mxu0
  %v996 = vadd.f32 %v830, %v995
  %997 = vmatmul.bf16.gmra.mxu0 %v820
  %v998 = vpop.f32.mrf.mxu0
  %v999 = vadd.f32 %v830, %v998
  %v1000 = vpop.f32.mrf.mxu0
  %v1001 = vadd.f32 %v830, %v1000
  %1002 = vmatmul.bf16.gmra.mxu0 %v821
  %v1003 = vpop.f32.mrf.mxu0
  %v1004 = vadd.f32 %v830, %v1003
  %v1005 = vpop.f32.mrf.mxu0
  %v1006 = vadd.f32 %v830, %v1005
  %1007 = vmatmul.bf16.gmra.mxu0 %v822
  %v1008 = vpop.f32.mrf.mxu0
  %v1009 = vadd.f32 %v830, %v1008
  %v1010 = vpop.f32.mrf.mxu0
  %v1011 = vadd.f32 %v830, %v1010
  %1012 = vmatmul.bf16.gmra.mxu0 %v823
  %v1013 = vpop.f32.mrf.mxu0
  %v1014 = vadd.f32 %v830, %v1013
  %v1015 = vpop.f32.mrf.mxu0
  %v1016 = vadd.f32 %v830, %v1015
  %1017 = vmatmul.bf16.gmra.mxu0 %v824
  %v1018 = vpop.f32.mrf.mxu0
  %v1019 = vadd.f32 %v830, %v1018
  %v1020 = vpop.f32.mrf.mxu0
  %v1021 = vadd.f32 %v830, %v1020
  %1022 = vmatmul.bf16.gmra.mxu0 %v825
  %v1023 = vpop.f32.mrf.mxu0
  %v1024 = vadd.f32 %v830, %v1023
  %v1025 = vpop.f32.mrf.mxu0
  %v1026 = vadd.f32 %v830, %v1025
  %1027 = vmatmul.bf16.gmra.mxu0 %v826
  %v1028 = vpop.f32.mrf.mxu0
  %v1029 = vadd.f32 %v830, %v1028
  %v1030 = vpop.f32.mrf.mxu0
  %v1031 = vadd.f32 %v830, %v1030
  %1032 = vmatmul.bf16.gmra.mxu0 %v827
  %v1033 = vpop.f32.mrf.mxu0
  %v1034 = vadd.f32 %v830, %v1033
  %v1035 = vpop.f32.mrf.mxu0
  %v1036 = vadd.f32 %v830, %v1035
  %1037 = vmatmul.bf16.gmra.mxu0 %v828
  %v1038 = vpop.f32.mrf.mxu0
  %v1039 = vadd.f32 %v830, %v1038
  %v1040 = vpop.f32.mrf.mxu0
  %v1041 = vadd.f32 %v830, %v1040
  %1042 = vmatmul.bf16.gmra.mxu0 %v829
  %v1043 = vpop.f32.mrf.mxu0
  %v1044 = vadd.f32 %v830, %v1043
  %v1045 = vpop.f32.mrf.mxu0
  %v1046 = vadd.f32 %v830, %v1045
  %1047 = vdwg.mxu0
  %v1048 = vmax.f32 %v889, 0.0
  %v1049 = vmax.f32 %v891, 0.0
  %v1050 = vmax.f32 %v894, 0.0
  %v1051 = vmax.f32 %v896, 0.0
  %v1052 = vmax.f32 %v899, 0.0
  %v1053 = vmax.f32 %v901, 0.0
  %v1054 = vmax.f32 %v904, 0.0
  %v1055 = vmax.f32 %v906, 0.0
  %v1056 = vmax.f32 %v909, 0.0
  %v1057 = vmax.f32 %v911, 0.0
  %v1058 = vmax.f32 %v914, 0.0
  %v1059 = vmax.f32 %v916, 0.0
  %v1060 = vmax.f32 %v919, 0.0
  %v1061 = vmax.f32 %v921, 0.0
  %v1062 = vmax.f32 %v924, 0.0
  %v1063 = vmax.f32 %v926, 0.0
  %v1064 = vmax.f32 %v929, 0.0
  %v1065 = vmax.f32 %v931, 0.0
  %v1066 = vmax.f32 %v934, 0.0
  %v1067 = vmax.f32 %v936, 0.0
  %v1068 = vmax.f32 %v939, 0.0
  %v1069 = vmax.f32 %v941, 0.0
  %v1070 = vmax.f32 %v944, 0.0
  %v1071 = vmax.f32 %v946, 0.0
  %v1072 = vmax.f32 %v949, 0.0
  %v1073 = vmax.f32 %v951, 0.0
  %v1074 = vmax.f32 %v954, 0.0
  %v1075 = vmax.f32 %v956, 0.0
  %v1076 = vmax.f32 %v959, 0.0
  %v1077 = vmax.f32 %v961, 0.0
  %v1078 = vmax.f32 %v964, 0.0
  %v1079 = vmax.f32 %v966, 0.0
  %v1080 = vmax.f32 %v969, 0.0
  %v1081 = vmax.f32 %v971, 0.0
  %v1082 = vmax.f32 %v974, 0.0
  %v1083 = vmax.f32 %v976, 0.0
  %v1084 = vmax.f32 %v979, 0.0
  %v1085 = vmax.f32 %v981, 0.0
  %v1086 = vmax.f32 %v984, 0.0
  %v1087 = vmax.f32 %v986, 0.0
  %v1088 = vmax.f32 %v989, 0.0
  %v1089 = vmax.f32 %v991, 0.0
  %v1090 = vmax.f32 %v994, 0.0
  %v1091 = vmax.f32 %v996, 0.0
  %v1092 = vmax.f32 %v999, 0.0
  %v1093 = vmax.f32 %v1001, 0.0
  %v1094 = vmax.f32 %v1004, 0.0
  %v1095 = vmax.f32 %v1006, 0.0
  %v1096 = vmax.f32 %v1009, 0.0
  %v1097 = vmax.f32 %v1011, 0.0
  %v1098 = vmax.f32 %v1014, 0.0
  %v1099 = vmax.f32 %v1016, 0.0
  %v1100 = vmax.f32 %v1019, 0.0
  %v1101 = vmax.f32 %v1021, 0.0
  %v1102 = vmax.f32 %v1024, 0.0
  %v1103 = vmax.f32 %v1026, 0.0
  %v1104 = vmax.f32 %v1029, 0.0
  %v1105 = vmax.f32 %v1031, 0.0
  %v1106 = vmax.f32 %v1034, 0.0
  %v1107 = vmax.f32 %v1036, 0.0
  %v1108 = vmax.f32 %v1039, 0.0
  %v1109 = vmax.f32 %v1041, 0.0
  %v1110 = vmax.f32 %v1044, 0.0
  %v1111 = vmax.f32 %v1046, 0.0
  %v1112 = vld [vmem:[%s2 + $0x88] sm:$0xf]
  %v1113 = vld [vmem:[%s2 + $0x8c] sm:$0xf]
  %v1114 = vld [vmem:[%s2 + $0x90] sm:$0xf]
  %v1115 = vld [vmem:[%s2 + $0x94] sm:$0xf]
  %v1116 = vld [vmem:[%s2 + $0x98] sm:$0xf]
  %v1117 = vld [vmem:[%s2 + $0x9c] sm:$0xf]
  %v1118 = vld [vmem:[%s2 + $0xa0] sm:$0xf]
  %v1119 = vld [vmem:[%s2 + $0xa4] sm:$0xf]
  %v1120 = vld [vmem:[%s2 + $0xa8] sm:$0xf]
  %v1121 = vld [vmem:[%s2 + $0xac] sm:$0xf]
  %v1122 = vld [vmem:[%s2 + $0xb0] sm:$0xf]
  %v1123 = vld [vmem:[%s2 + $0xb4] sm:$0xf]
  %v1124 = vld [vmem:[%s2 + $0xb8] sm:$0xf]
  %v1125 = vld [vmem:[%s2 + $0xbc] sm:$0xf]
  %v1126 = vld [vmem:[%s2 + $0xc0] sm:$0xf]
  %v1127 = vld [vmem:[%s2 + $0xc4] sm:$0xf]
  %v1128 = vpack.c.bf16 %v1049, %v1048
  %v1129 = vpack.c.bf16 %v1051, %v1050
  %v1130 = vpack.c.bf16 %v1053, %v1052
  %v1131 = vpack.c.bf16 %v1055, %v1054
  %v1132 = vpack.c.bf16 %v1057, %v1056
  %v1133 = vpack.c.bf16 %v1059, %v1058
  %v1134 = vpack.c.bf16 %v1061, %v1060
  %v1135 = vpack.c.bf16 %v1063, %v1062
  %v1136 = vpack.c.bf16 %v1065, %v1064
  %v1137 = vpack.c.bf16 %v1067, %v1066
  %v1138 = vpack.c.bf16 %v1069, %v1068
  %v1139 = vpack.c.bf16 %v1071, %v1070
  %v1140 = vpack.c.bf16 %v1073, %v1072
  %v1141 = vpack.c.bf16 %v1075, %v1074
  %v1142 = vpack.c.bf16 %v1077, %v1076
  %v1143 = vpack.c.bf16 %v1079, %v1078
  %v1144 = vpack.c.bf16 %v1081, %v1080
  %v1145 = vpack.c.bf16 %v1083, %v1082
  %v1146 = vpack.c.bf16 %v1085, %v1084
  %v1147 = vpack.c.bf16 %v1087, %v1086
  %v1148 = vpack.c.bf16 %v1089, %v1088
  %v1149 = vpack.c.bf16 %v1091, %v1090
  %v1150 = vpack.c.bf16 %v1093, %v1092
  %v1151 = vpack.c.bf16 %v1095, %v1094
  %v1152 = vpack.c.bf16 %v1097, %v1096
  %v1153 = vpack.c.bf16 %v1099, %v1098
  %v1154 = vpack.c.bf16 %v1101, %v1100
  %v1155 = vpack.c.bf16 %v1103, %v1102
  %v1156 = vpack.c.bf16 %v1105, %v1104
  %v1157 = vpack.c.bf16 %v1107, %v1106
  %v1158 = vpack.c.bf16 %v1109, %v1108
  %v1159 = vpack.c.bf16 %v1111, %v1110
  %v1160 = vperm.slane %v16, 3
  %v1177 = vunpack.c.l.b16 %v1112
  %v1178 = vunpack.c.l.b16 %v1113
  %v1179 = vunpack.c.l.b16 %v1114
  %v1180 = vunpack.c.l.b16 %v1115
  %v1181 = vunpack.c.l.b16 %v1116
  %v1182 = vunpack.c.l.b16 %v1117
  %v1183 = vunpack.c.l.b16 %v1118
  %v1184 = vunpack.c.l.b16 %v1119
  %v1185 = vunpack.c.l.b16 %v1120
  %v1186 = vunpack.c.l.b16 %v1121
  %v1187 = vunpack.c.l.b16 %v1122
  %v1188 = vunpack.c.l.b16 %v1123
  %v1189 = vunpack.c.l.b16 %v1124
  %v1190 = vunpack.c.l.b16 %v1125
  %v1191 = vunpack.c.l.b16 %v1126
  %v1192 = vunpack.c.l.b16 %v1127
  %v1193 = vpack.c.b16 %v1178, %v1177
  %v1194 = vpack.c.b16 %v1180, %v1179
  %v1195 = vpack.c.b16 %v1182, %v1181
  %v1196 = vpack.c.b16 %v1184, %v1183
  %v1197 = vpack.c.b16 %v1186, %v1185
  %v1198 = vpack.c.b16 %v1188, %v1187
  %v1199 = vpack.c.b16 %v1190, %v1189
  %v1200 = vpack.c.b16 %v1192, %v1191
  %1209 = vmatpush.bf16.msra.mxu0 %v1200
  %1210 = vmatpush.bf16.msra.mxu0 %v1199
  %1211 = vmatpush.bf16.msra.mxu0 %v1198
  %1212 = vmatpush.bf16.msra.mxu0 %v1197
  %1213 = vmatpush.bf16.msra.mxu0 %v1196
  %1214 = vmatpush.bf16.msra.mxu0 %v1195
  %1215 = vmatpush.bf16.msra.mxu0 %v1194
  %1216 = vmatpush.bf16.msra.mxu0 %v1193
  %1217 = vmatmul.bf16.gmra.mxu0 %v1128
  %v1218 = vpop.f32.mrf.mxu0
  %v1219 = vadd.f32 %v1160, %v1218
  %v1220 = vpop.f32.mrf.mxu0
  %v1221 = vadd.f32 %v1160, %v1220
  %1222 = vmatmul.bf16.gmra.mxu0 %v1129
  %v1223 = vpop.f32.mrf.mxu0
  %v1224 = vadd.f32 %v1160, %v1223
  %v1225 = vpop.f32.mrf.mxu0
  %v1226 = vadd.f32 %v1160, %v1225
  %1227 = vmatmul.bf16.gmra.mxu0 %v1130
  %v1228 = vpop.f32.mrf.mxu0
  %v1229 = vadd.f32 %v1160, %v1228
  %v1230 = vpop.f32.mrf.mxu0
  %v1231 = vadd.f32 %v1160, %v1230
  %1232 = vmatmul.bf16.gmra.mxu0 %v1131
  %v1233 = vpop.f32.mrf.mxu0
  %v1234 = vadd.f32 %v1160, %v1233
  %v1235 = vpop.f32.mrf.mxu0
  %v1236 = vadd.f32 %v1160, %v1235
  %1237 = vmatmul.bf16.gmra.mxu0 %v1132
  %v1238 = vpop.f32.mrf.mxu0
  %v1239 = vadd.f32 %v1160, %v1238
  %v1240 = vpop.f32.mrf.mxu0
  %v1241 = vadd.f32 %v1160, %v1240
  %1242 = vmatmul.bf16.gmra.mxu0 %v1133
  %v1243 = vpop.f32.mrf.mxu0
  %v1244 = vadd.f32 %v1160, %v1243
  %v1245 = vpop.f32.mrf.mxu0
  %v1246 = vadd.f32 %v1160, %v1245
  %1247 = vmatmul.bf16.gmra.mxu0 %v1134
  %v1248 = vpop.f32.mrf.mxu0
  %v1249 = vadd.f32 %v1160, %v1248
  %v1250 = vpop.f32.mrf.mxu0
  %v1251 = vadd.f32 %v1160, %v1250
  %1252 = vmatmul.bf16.gmra.mxu0 %v1135
  %v1253 = vpop.f32.mrf.mxu0
  %v1254 = vadd.f32 %v1160, %v1253
  %v1255 = vpop.f32.mrf.mxu0
  %v1256 = vadd.f32 %v1160, %v1255
  %1257 = vmatmul.bf16.gmra.mxu0 %v1136
  %v1258 = vpop.f32.mrf.mxu0
  %v1259 = vadd.f32 %v1160, %v1258
  %v1260 = vpop.f32.mrf.mxu0
  %v1261 = vadd.f32 %v1160, %v1260
  %1262 = vmatmul.bf16.gmra.mxu0 %v1137
  %v1263 = vpop.f32.mrf.mxu0
  %v1264 = vadd.f32 %v1160, %v1263
  %v1265 = vpop.f32.mrf.mxu0
  %v1266 = vadd.f32 %v1160, %v1265
  %1267 = vmatmul.bf16.gmra.mxu0 %v1138
  %v1268 = vpop.f32.mrf.mxu0
  %v1269 = vadd.f32 %v1160, %v1268
  %v1270 = vpop.f32.mrf.mxu0
  %v1271 = vadd.f32 %v1160, %v1270
  %1272 = vmatmul.bf16.gmra.mxu0 %v1139
  %v1273 = vpop.f32.mrf.mxu0
  %v1274 = vadd.f32 %v1160, %v1273
  %v1275 = vpop.f32.mrf.mxu0
  %v1276 = vadd.f32 %v1160, %v1275
  %1277 = vmatmul.bf16.gmra.mxu0 %v1140
  %v1278 = vpop.f32.mrf.mxu0
  %v1279 = vadd.f32 %v1160, %v1278
  %v1280 = vpop.f32.mrf.mxu0
  %v1281 = vadd.f32 %v1160, %v1280
  %1282 = vmatmul.bf16.gmra.mxu0 %v1141
  %v1283 = vpop.f32.mrf.mxu0
  %v1284 = vadd.f32 %v1160, %v1283
  %v1285 = vpop.f32.mrf.mxu0
  %v1286 = vadd.f32 %v1160, %v1285
  %1287 = vmatmul.bf16.gmra.mxu0 %v1142
  %v1288 = vpop.f32.mrf.mxu0
  %v1289 = vadd.f32 %v1160, %v1288
  %v1290 = vpop.f32.mrf.mxu0
  %v1291 = vadd.f32 %v1160, %v1290
  %1292 = vmatmul.bf16.gmra.mxu0 %v1143
  %v1293 = vpop.f32.mrf.mxu0
  %v1294 = vadd.f32 %v1160, %v1293
  %v1295 = vpop.f32.mrf.mxu0
  %v1296 = vadd.f32 %v1160, %v1295
  %1297 = vmatmul.bf16.gmra.mxu0 %v1144
  %v1298 = vpop.f32.mrf.mxu0
  %v1299 = vadd.f32 %v1160, %v1298
  %v1300 = vpop.f32.mrf.mxu0
  %v1301 = vadd.f32 %v1160, %v1300
  %1302 = vmatmul.bf16.gmra.mxu0 %v1145
  %v1303 = vpop.f32.mrf.mxu0
  %v1304 = vadd.f32 %v1160, %v1303
  %v1305 = vpop.f32.mrf.mxu0
  %v1306 = vadd.f32 %v1160, %v1305
  %1307 = vmatmul.bf16.gmra.mxu0 %v1146
  %v1308 = vpop.f32.mrf.mxu0
  %v1309 = vadd.f32 %v1160, %v1308
  %v1310 = vpop.f32.mrf.mxu0
  %v1311 = vadd.f32 %v1160, %v1310
  %1312 = vmatmul.bf16.gmra.mxu0 %v1147
  %v1313 = vpop.f32.mrf.mxu0
  %v1314 = vadd.f32 %v1160, %v1313
  %v1315 = vpop.f32.mrf.mxu0
  %v1316 = vadd.f32 %v1160, %v1315
  %1317 = vmatmul.bf16.gmra.mxu0 %v1148
  %v1318 = vpop.f32.mrf.mxu0
  %v1319 = vadd.f32 %v1160, %v1318
  %v1320 = vpop.f32.mrf.mxu0
  %v1321 = vadd.f32 %v1160, %v1320
  %1322 = vmatmul.bf16.gmra.mxu0 %v1149
  %v1323 = vpop.f32.mrf.mxu0
  %v1324 = vadd.f32 %v1160, %v1323
  %v1325 = vpop.f32.mrf.mxu0
  %v1326 = vadd.f32 %v1160, %v1325
  %1327 = vmatmul.bf16.gmra.mxu0 %v1150
  %v1328 = vpop.f32.mrf.mxu0
  %v1329 = vadd.f32 %v1160, %v1328
  %v1330 = vpop.f32.mrf.mxu0
  %v1331 = vadd.f32 %v1160, %v1330
  %1332 = vmatmul.bf16.gmra.mxu0 %v1151
  %v1333 = vpop.f32.mrf.mxu0
  %v1334 = vadd.f32 %v1160, %v1333
  %v1335 = vpop.f32.mrf.mxu0
  %v1336 = vadd.f32 %v1160, %v1335
  %1337 = vmatmul.bf16.gmra.mxu0 %v1152
  %v1338 = vpop.f32.mrf.mxu0
  %v1339 = vadd.f32 %v1160, %v1338
  %v1340 = vpop.f32.mrf.mxu0
  %v1341 = vadd.f32 %v1160, %v1340
  %1342 = vmatmul.bf16.gmra.mxu0 %v1153
  %v1343 = vpop.f32.mrf.mxu0
  %v1344 = vadd.f32 %v1160, %v1343
  %v1345 = vpop.f32.mrf.mxu0
  %v1346 = vadd.f32 %v1160, %v1345
  %1347 = vmatmul.bf16.gmra.mxu0 %v1154
  %v1348 = vpop.f32.mrf.mxu0
  %v1349 = vadd.f32 %v1160, %v1348
  %v1350 = vpop.f32.mrf.mxu0
  %v1351 = vadd.f32 %v1160, %v1350
  %1352 = vmatmul.bf16.gmra.mxu0 %v1155
  %v1353 = vpop.f32.mrf.mxu0
  %v1354 = vadd.f32 %v1160, %v1353
  %v1355 = vpop.f32.mrf.mxu0
  %v1356 = vadd.f32 %v1160, %v1355
  %1357 = vmatmul.bf16.gmra.mxu0 %v1156
  %v1358 = vpop.f32.mrf.mxu0
  %v1359 = vadd.f32 %v1160, %v1358
  %v1360 = vpop.f32.mrf.mxu0
  %v1361 = vadd.f32 %v1160, %v1360
  %1362 = vmatmul.bf16.gmra.mxu0 %v1157
  %v1363 = vpop.f32.mrf.mxu0
  %v1364 = vadd.f32 %v1160, %v1363
  %v1365 = vpop.f32.mrf.mxu0
  %v1366 = vadd.f32 %v1160, %v1365
  %1367 = vmatmul.bf16.gmra.mxu0 %v1158
  %v1368 = vpop.f32.mrf.mxu0
  %v1369 = vadd.f32 %v1160, %v1368
  %v1370 = vpop.f32.mrf.mxu0
  %v1371 = vadd.f32 %v1160, %v1370
  %1372 = vmatmul.bf16.gmra.mxu0 %v1159
  %v1373 = vpop.f32.mrf.mxu0
  %v1374 = vadd.f32 %v1160, %v1373
  %v1375 = vpop.f32.mrf.mxu0
  %v1376 = vadd.f32 %v1160, %v1375
  %1377 = vdwg.mxu0
  %v1378 = vld [vmem:[%s1] sm:$0xff]
  %v1379 = vld [vmem:[%s1 + $0x8] sm:$0xff]
  %v1380 = vld [vmem:[%s1 + $0x10] sm:$0xff]
  %v1381 = vld [vmem:[%s1 + $0x18] sm:$0xff]
  %v1382 = vld [vmem:[%s1 + $0x20] sm:$0xff]
  %v1383 = vld [vmem:[%s1 + $0x28] sm:$0xff]
  %v1384 = vld [vmem:[%s1 + $0x30] sm:$0xff]
  %v1385 = vld [vmem:[%s1 + $0x38] sm:$0xff]
  %v1386 = vld [vmem:[%s1 + $0x40] sm:$0xff]
  %v1387 = vld [vmem:[%s1 + $0x48] sm:$0xff]
  %v1388 = vld [vmem:[%s1 + $0x50] sm:$0xff]
  %v1389 = vld [vmem:[%s1 + $0x58] sm:$0xff]
  %v1390 = vld [vmem:[%s1 + $0x60] sm:$0xff]
  %v1391 = vld [vmem:[%s1 + $0x68] sm:$0xff]
  %v1392 = vld [vmem:[%s1 + $0x70] sm:$0xff]
  %v1393 = vld [vmem:[%s1 + $0x78] sm:$0xff]
  %v1394 = vld [vmem:[%s1 + $0x80] sm:$0xff]
  %v1395 = vld [vmem:[%s1 + $0x88] sm:$0xff]
  %v1396 = vld [vmem:[%s1 + $0x90] sm:$0xff]
  %v1397 = vld [vmem:[%s1 + $0x98] sm:$0xff]
  %v1398 = vld [vmem:[%s1 + $0xa0] sm:$0xff]
  %v1399 = vld [vmem:[%s1 + $0xa8] sm:$0xff]
  %v1400 = vld [vmem:[%s1 + $0xb0] sm:$0xff]
  %v1401 = vld [vmem:[%s1 + $0xb8] sm:$0xff]
  %v1402 = vld [vmem:[%s1 + $0xc0] sm:$0xff]
  %v1403 = vld [vmem:[%s1 + $0xc8] sm:$0xff]
  %v1404 = vld [vmem:[%s1 + $0xd0] sm:$0xff]
  %v1405 = vld [vmem:[%s1 + $0xd8] sm:$0xff]
  %v1406 = vld [vmem:[%s1 + $0xe0] sm:$0xff]
  %v1407 = vld [vmem:[%s1 + $0xe8] sm:$0xff]
  %v1408 = vld [vmem:[%s1 + $0xf0] sm:$0xff]
  %v1409 = vld [vmem:[%s1 + $0xf8] sm:$0xff]
  %v1410 = vld [vmem:[%s1 + $0x100] sm:$0xff]
  %v1411 = vld [vmem:[%s1 + $0x108] sm:$0xff]
  %v1412 = vld [vmem:[%s1 + $0x110] sm:$0xff]
  %v1413 = vld [vmem:[%s1 + $0x118] sm:$0xff]
  %v1414 = vld [vmem:[%s1 + $0x120] sm:$0xff]
  %v1415 = vld [vmem:[%s1 + $0x128] sm:$0xff]
  %v1416 = vld [vmem:[%s1 + $0x130] sm:$0xff]
  %v1417 = vld [vmem:[%s1 + $0x138] sm:$0xff]
  %v1418 = vld [vmem:[%s1 + $0x140] sm:$0xff]
  %v1419 = vld [vmem:[%s1 + $0x148] sm:$0xff]
  %v1420 = vld [vmem:[%s1 + $0x150] sm:$0xff]
  %v1421 = vld [vmem:[%s1 + $0x158] sm:$0xff]
  %v1422 = vld [vmem:[%s1 + $0x160] sm:$0xff]
  %v1423 = vld [vmem:[%s1 + $0x168] sm:$0xff]
  %v1424 = vld [vmem:[%s1 + $0x170] sm:$0xff]
  %v1425 = vld [vmem:[%s1 + $0x178] sm:$0xff]
  %v1426 = vld [vmem:[%s1 + $0x180] sm:$0xff]
  %v1427 = vld [vmem:[%s1 + $0x188] sm:$0xff]
  %v1428 = vld [vmem:[%s1 + $0x190] sm:$0xff]
  %v1429 = vld [vmem:[%s1 + $0x198] sm:$0xff]
  %v1430 = vld [vmem:[%s1 + $0x1a0] sm:$0xff]
  %v1431 = vld [vmem:[%s1 + $0x1a8] sm:$0xff]
  %v1432 = vld [vmem:[%s1 + $0x1b0] sm:$0xff]
  %v1433 = vld [vmem:[%s1 + $0x1b8] sm:$0xff]
  %v1434 = vld [vmem:[%s1 + $0x1c0] sm:$0xff]
  %v1435 = vld [vmem:[%s1 + $0x1c8] sm:$0xff]
  %v1436 = vld [vmem:[%s1 + $0x1d0] sm:$0xff]
  %v1437 = vld [vmem:[%s1 + $0x1d8] sm:$0xff]
  %v1438 = vld [vmem:[%s1 + $0x1e0] sm:$0xff]
  %v1439 = vld [vmem:[%s1 + $0x1e8] sm:$0xff]
  %v1440 = vld [vmem:[%s1 + $0x1f0] sm:$0xff]
  %v1441 = vld [vmem:[%s1 + $0x1f8] sm:$0xff]
  %v1442 = vlaneseq
  %v1443 = vand.u32 %v1442, 127
  %v1444 = vand.u32 %v1443, 3
  %1445 = vset.pattern.permute.xlu0 0
  %1446 = vperm.xlu0 %1445, %v1378
  %v1447 = vpop.permute.xlu0 %1446
  %1448 = vset.pattern.permute.xlu0 0
  %1449 = vperm.xlu0 %1448, %v1379
  %v1450 = vpop.permute.xlu0 %1449
  %1451 = vset.pattern.permute.xlu0 0
  %1452 = vperm.xlu0 %1451, %v1380
  %v1453 = vpop.permute.xlu0 %1452
  %1454 = vset.pattern.permute.xlu0 0
  %1455 = vperm.xlu0 %1454, %v1381
  %v1456 = vpop.permute.xlu0 %1455
  %1457 = vset.pattern.permute.xlu0 0
  %1458 = vperm.xlu0 %1457, %v1382
  %v1459 = vpop.permute.xlu0 %1458
  %1460 = vset.pattern.permute.xlu0 0
  %1461 = vperm.xlu0 %1460, %v1383
  %v1462 = vpop.permute.xlu0 %1461
  %1463 = vset.pattern.permute.xlu0 0
  %1464 = vperm.xlu0 %1463, %v1384
  %v1465 = vpop.permute.xlu0 %1464
  %1466 = vset.pattern.permute.xlu0 0
  %1467 = vperm.xlu0 %1466, %v1385
  %v1468 = vpop.permute.xlu0 %1467
  %1469 = vset.pattern.permute.xlu0 0
  %1470 = vperm.xlu0 %1469, %v1386
  %v1471 = vpop.permute.xlu0 %1470
  %1472 = vset.pattern.permute.xlu0 0
  %1473 = vperm.xlu0 %1472, %v1387
  %v1474 = vpop.permute.xlu0 %1473
  %1475 = vset.pattern.permute.xlu0 0
  %1476 = vperm.xlu0 %1475, %v1388
  %v1477 = vpop.permute.xlu0 %1476
  %1478 = vset.pattern.permute.xlu0 0
  %1479 = vperm.xlu0 %1478, %v1389
  %v1480 = vpop.permute.xlu0 %1479
  %1481 = vset.pattern.permute.xlu0 0
  %1482 = vperm.xlu0 %1481, %v1390
  %v1483 = vpop.permute.xlu0 %1482
  %1484 = vset.pattern.permute.xlu0 0
  %1485 = vperm.xlu0 %1484, %v1391
  %v1486 = vpop.permute.xlu0 %1485
  %1487 = vset.pattern.permute.xlu0 0
  %1488 = vperm.xlu0 %1487, %v1392
  %v1489 = vpop.permute.xlu0 %1488
  %1490 = vset.pattern.permute.xlu0 0
  %1491 = vperm.xlu0 %1490, %v1393
  %v1492 = vpop.permute.xlu0 %1491
  %1493 = vset.pattern.permute.xlu0 0
  %1494 = vperm.xlu0 %1493, %v1394
  %v1495 = vpop.permute.xlu0 %1494
  %1496 = vset.pattern.permute.xlu0 0
  %1497 = vperm.xlu0 %1496, %v1395
  %v1498 = vpop.permute.xlu0 %1497
  %1499 = vset.pattern.permute.xlu0 0
  %1500 = vperm.xlu0 %1499, %v1396
  %v1501 = vpop.permute.xlu0 %1500
  %1502 = vset.pattern.permute.xlu0 0
  %1503 = vperm.xlu0 %1502, %v1397
  %v1504 = vpop.permute.xlu0 %1503
  %1505 = vset.pattern.permute.xlu0 0
  %1506 = vperm.xlu0 %1505, %v1398
  %v1507 = vpop.permute.xlu0 %1506
  %1508 = vset.pattern.permute.xlu0 0
  %1509 = vperm.xlu0 %1508, %v1399
  %v1510 = vpop.permute.xlu0 %1509
  %1511 = vset.pattern.permute.xlu0 0
  %1512 = vperm.xlu0 %1511, %v1400
  %v1513 = vpop.permute.xlu0 %1512
  %1514 = vset.pattern.permute.xlu0 0
  %1515 = vperm.xlu0 %1514, %v1401
  %v1516 = vpop.permute.xlu0 %1515
  %1517 = vset.pattern.permute.xlu0 0
  %1518 = vperm.xlu0 %1517, %v1402
  %v1519 = vpop.permute.xlu0 %1518
  %1520 = vset.pattern.permute.xlu0 0
  %1521 = vperm.xlu0 %1520, %v1403
  %v1522 = vpop.permute.xlu0 %1521
  %1523 = vset.pattern.permute.xlu0 0
  %1524 = vperm.xlu0 %1523, %v1404
  %v1525 = vpop.permute.xlu0 %1524
  %1526 = vset.pattern.permute.xlu0 0
  %1527 = vperm.xlu0 %1526, %v1405
  %v1528 = vpop.permute.xlu0 %1527
  %1529 = vset.pattern.permute.xlu0 0
  %1530 = vperm.xlu0 %1529, %v1406
  %v1531 = vpop.permute.xlu0 %1530
  %1532 = vset.pattern.permute.xlu0 0
  %1533 = vperm.xlu0 %1532, %v1407
  %v1534 = vpop.permute.xlu0 %1533
  %1535 = vset.pattern.permute.xlu0 0
  %1536 = vperm.xlu0 %1535, %v1408
  %v1537 = vpop.permute.xlu0 %1536
  %1538 = vset.pattern.permute.xlu0 0
  %1539 = vperm.xlu0 %1538, %v1409
  %v1540 = vpop.permute.xlu0 %1539
  %1541 = vset.pattern.permute.xlu0 0
  %1542 = vperm.xlu0 %1541, %v1410
  %v1543 = vpop.permute.xlu0 %1542
  %1544 = vset.pattern.permute.xlu0 0
  %1545 = vperm.xlu0 %1544, %v1411
  %v1546 = vpop.permute.xlu0 %1545
  %1547 = vset.pattern.permute.xlu0 0
  %1548 = vperm.xlu0 %1547, %v1412
  %v1549 = vpop.permute.xlu0 %1548
  %1550 = vset.pattern.permute.xlu0 0
  %1551 = vperm.xlu0 %1550, %v1413
  %v1552 = vpop.permute.xlu0 %1551
  %1553 = vset.pattern.permute.xlu0 0
  %1554 = vperm.xlu0 %1553, %v1414
  %v1555 = vpop.permute.xlu0 %1554
  %1556 = vset.pattern.permute.xlu0 0
  %1557 = vperm.xlu0 %1556, %v1415
  %v1558 = vpop.permute.xlu0 %1557
  %1559 = vset.pattern.permute.xlu0 0
  %1560 = vperm.xlu0 %1559, %v1416
  %v1561 = vpop.permute.xlu0 %1560
  %1562 = vset.pattern.permute.xlu0 0
  %1563 = vperm.xlu0 %1562, %v1417
  %v1564 = vpop.permute.xlu0 %1563
  %1565 = vset.pattern.permute.xlu0 0
  %1566 = vperm.xlu0 %1565, %v1418
  %v1567 = vpop.permute.xlu0 %1566
  %1568 = vset.pattern.permute.xlu0 0
  %1569 = vperm.xlu0 %1568, %v1419
  %v1570 = vpop.permute.xlu0 %1569
  %1571 = vset.pattern.permute.xlu0 0
  %1572 = vperm.xlu0 %1571, %v1420
  %v1573 = vpop.permute.xlu0 %1572
  %1574 = vset.pattern.permute.xlu0 0
  %1575 = vperm.xlu0 %1574, %v1421
  %v1576 = vpop.permute.xlu0 %1575
  %1577 = vset.pattern.permute.xlu0 0
  %1578 = vperm.xlu0 %1577, %v1422
  %v1579 = vpop.permute.xlu0 %1578
  %1580 = vset.pattern.permute.xlu0 0
  %1581 = vperm.xlu0 %1580, %v1423
  %v1582 = vpop.permute.xlu0 %1581
  %1583 = vset.pattern.permute.xlu0 0
  %1584 = vperm.xlu0 %1583, %v1424
  %v1585 = vpop.permute.xlu0 %1584
  %1586 = vset.pattern.permute.xlu0 0
  %1587 = vperm.xlu0 %1586, %v1425
  %v1588 = vpop.permute.xlu0 %1587
  %1589 = vset.pattern.permute.xlu0 0
  %1590 = vperm.xlu0 %1589, %v1426
  %v1591 = vpop.permute.xlu0 %1590
  %1592 = vset.pattern.permute.xlu0 0
  %1593 = vperm.xlu0 %1592, %v1427
  %v1594 = vpop.permute.xlu0 %1593
  %1595 = vset.pattern.permute.xlu0 0
  %1596 = vperm.xlu0 %1595, %v1428
  %v1597 = vpop.permute.xlu0 %1596
  %1598 = vset.pattern.permute.xlu0 0
  %1599 = vperm.xlu0 %1598, %v1429
  %v1600 = vpop.permute.xlu0 %1599
  %1601 = vset.pattern.permute.xlu0 0
  %1602 = vperm.xlu0 %1601, %v1430
  %v1603 = vpop.permute.xlu0 %1602
  %1604 = vset.pattern.permute.xlu0 0
  %1605 = vperm.xlu0 %1604, %v1431
  %v1606 = vpop.permute.xlu0 %1605
  %1607 = vset.pattern.permute.xlu0 0
  %1608 = vperm.xlu0 %1607, %v1432
  %v1609 = vpop.permute.xlu0 %1608
  %1610 = vset.pattern.permute.xlu0 0
  %1611 = vperm.xlu0 %1610, %v1433
  %v1612 = vpop.permute.xlu0 %1611
  %1613 = vset.pattern.permute.xlu0 0
  %1614 = vperm.xlu0 %1613, %v1434
  %v1615 = vpop.permute.xlu0 %1614
  %1616 = vset.pattern.permute.xlu0 0
  %1617 = vperm.xlu0 %1616, %v1435
  %v1618 = vpop.permute.xlu0 %1617
  %1619 = vset.pattern.permute.xlu0 0
  %1620 = vperm.xlu0 %1619, %v1436
  %v1621 = vpop.permute.xlu0 %1620
  %1622 = vset.pattern.permute.xlu0 0
  %1623 = vperm.xlu0 %1622, %v1437
  %v1624 = vpop.permute.xlu0 %1623
  %1625 = vset.pattern.permute.xlu0 0
  %1626 = vperm.xlu0 %1625, %v1438
  %v1627 = vpop.permute.xlu0 %1626
  %1628 = vset.pattern.permute.xlu0 0
  %1629 = vperm.xlu0 %1628, %v1439
  %v1630 = vpop.permute.xlu0 %1629
  %1631 = vset.pattern.permute.xlu0 0
  %1632 = vperm.xlu0 %1631, %v1440
  %v1633 = vpop.permute.xlu0 %1632
  %1634 = vset.pattern.permute.xlu0 0
  %1635 = vperm.xlu0 %1634, %v1441
  %v1636 = vpop.permute.xlu0 %1635
  %vm1637 = vcmp.eq.s32.totalorder %v1444, %v1447
  %vm1638 = vcmp.eq.s32.totalorder %v1444, %v1450
  %vm1639 = vcmp.eq.s32.totalorder %v1444, %v1453
  %vm1640 = vcmp.eq.s32.totalorder %v1444, %v1456
  %vm1641 = vcmp.eq.s32.totalorder %v1444, %v1459
  %vm1642 = vcmp.eq.s32.totalorder %v1444, %v1462
  %vm1643 = vcmp.eq.s32.totalorder %v1444, %v1465
  %vm1644 = vcmp.eq.s32.totalorder %v1444, %v1468
  %vm1645 = vcmp.eq.s32.totalorder %v1444, %v1471
  %vm1646 = vcmp.eq.s32.totalorder %v1444, %v1474
  %vm1647 = vcmp.eq.s32.totalorder %v1444, %v1477
  %vm1648 = vcmp.eq.s32.totalorder %v1444, %v1480
  %vm1649 = vcmp.eq.s32.totalorder %v1444, %v1483
  %vm1650 = vcmp.eq.s32.totalorder %v1444, %v1486
  %vm1651 = vcmp.eq.s32.totalorder %v1444, %v1489
  %vm1652 = vcmp.eq.s32.totalorder %v1444, %v1492
  %vm1653 = vcmp.eq.s32.totalorder %v1444, %v1495
  %vm1654 = vcmp.eq.s32.totalorder %v1444, %v1498
  %vm1655 = vcmp.eq.s32.totalorder %v1444, %v1501
  %vm1656 = vcmp.eq.s32.totalorder %v1444, %v1504
  %vm1657 = vcmp.eq.s32.totalorder %v1444, %v1507
  %vm1658 = vcmp.eq.s32.totalorder %v1444, %v1510
  %vm1659 = vcmp.eq.s32.totalorder %v1444, %v1513
  %vm1660 = vcmp.eq.s32.totalorder %v1444, %v1516
  %vm1661 = vcmp.eq.s32.totalorder %v1444, %v1519
  %vm1662 = vcmp.eq.s32.totalorder %v1444, %v1522
  %vm1663 = vcmp.eq.s32.totalorder %v1444, %v1525
  %vm1664 = vcmp.eq.s32.totalorder %v1444, %v1528
  %vm1665 = vcmp.eq.s32.totalorder %v1444, %v1531
  %vm1666 = vcmp.eq.s32.totalorder %v1444, %v1534
  %vm1667 = vcmp.eq.s32.totalorder %v1444, %v1537
  %vm1668 = vcmp.eq.s32.totalorder %v1444, %v1540
  %vm1669 = vcmp.eq.s32.totalorder %v1444, %v1543
  %vm1670 = vcmp.eq.s32.totalorder %v1444, %v1546
  %vm1671 = vcmp.eq.s32.totalorder %v1444, %v1549
  %vm1672 = vcmp.eq.s32.totalorder %v1444, %v1552
  %vm1673 = vcmp.eq.s32.totalorder %v1444, %v1555
  %vm1674 = vcmp.eq.s32.totalorder %v1444, %v1558
  %vm1675 = vcmp.eq.s32.totalorder %v1444, %v1561
  %vm1676 = vcmp.eq.s32.totalorder %v1444, %v1564
  %vm1677 = vcmp.eq.s32.totalorder %v1444, %v1567
  %vm1678 = vcmp.eq.s32.totalorder %v1444, %v1570
  %vm1679 = vcmp.eq.s32.totalorder %v1444, %v1573
  %vm1680 = vcmp.eq.s32.totalorder %v1444, %v1576
  %vm1681 = vcmp.eq.s32.totalorder %v1444, %v1579
  %vm1682 = vcmp.eq.s32.totalorder %v1444, %v1582
  %vm1683 = vcmp.eq.s32.totalorder %v1444, %v1585
  %vm1684 = vcmp.eq.s32.totalorder %v1444, %v1588
  %vm1685 = vcmp.eq.s32.totalorder %v1444, %v1591
  %vm1686 = vcmp.eq.s32.totalorder %v1444, %v1594
  %vm1687 = vcmp.eq.s32.totalorder %v1444, %v1597
  %vm1688 = vcmp.eq.s32.totalorder %v1444, %v1600
  %vm1689 = vcmp.eq.s32.totalorder %v1444, %v1603
  %vm1690 = vcmp.eq.s32.totalorder %v1444, %v1606
  %vm1691 = vcmp.eq.s32.totalorder %v1444, %v1609
  %vm1692 = vcmp.eq.s32.totalorder %v1444, %v1612
  %vm1693 = vcmp.eq.s32.totalorder %v1444, %v1615
  %vm1694 = vcmp.eq.s32.totalorder %v1444, %v1618
  %vm1695 = vcmp.eq.s32.totalorder %v1444, %v1621
  %vm1696 = vcmp.eq.s32.totalorder %v1444, %v1624
  %vm1697 = vcmp.eq.s32.totalorder %v1444, %v1627
  %vm1698 = vcmp.eq.s32.totalorder %v1444, %v1630
  %vm1699 = vcmp.eq.s32.totalorder %v1444, %v1633
  %vm1700 = vcmp.eq.s32.totalorder %v1444, %v1636
  %vm1701 = vcmp.lt.s32.totalorder %v1443, 20
  %vm1702 = vmand %vm1637, %vm1701
  %vm1703 = vmand %vm1638, %vm1701
  %vm1704 = vmand %vm1639, %vm1701
  %vm1705 = vmand %vm1640, %vm1701
  %vm1706 = vmand %vm1641, %vm1701
  %vm1707 = vmand %vm1642, %vm1701
  %vm1708 = vmand %vm1643, %vm1701
  %vm1709 = vmand %vm1644, %vm1701
  %vm1710 = vmand %vm1645, %vm1701
  %vm1711 = vmand %vm1646, %vm1701
  %vm1712 = vmand %vm1647, %vm1701
  %vm1713 = vmand %vm1648, %vm1701
  %vm1714 = vmand %vm1649, %vm1701
  %vm1715 = vmand %vm1650, %vm1701
  %vm1716 = vmand %vm1651, %vm1701
  %vm1717 = vmand %vm1652, %vm1701
  %vm1718 = vmand %vm1653, %vm1701
  %vm1719 = vmand %vm1654, %vm1701
  %vm1720 = vmand %vm1655, %vm1701
  %vm1721 = vmand %vm1656, %vm1701
  %vm1722 = vmand %vm1657, %vm1701
  %vm1723 = vmand %vm1658, %vm1701
  %vm1724 = vmand %vm1659, %vm1701
  %vm1725 = vmand %vm1660, %vm1701
  %vm1726 = vmand %vm1661, %vm1701
  %vm1727 = vmand %vm1662, %vm1701
  %vm1728 = vmand %vm1663, %vm1701
  %vm1729 = vmand %vm1664, %vm1701
  %vm1730 = vmand %vm1665, %vm1701
  %vm1731 = vmand %vm1666, %vm1701
  %vm1732 = vmand %vm1667, %vm1701
  %vm1733 = vmand %vm1668, %vm1701
  %vm1734 = vmand %vm1669, %vm1701
  %vm1735 = vmand %vm1670, %vm1701
  %vm1736 = vmand %vm1671, %vm1701
  %vm1737 = vmand %vm1672, %vm1701
  %vm1738 = vmand %vm1673, %vm1701
  %vm1739 = vmand %vm1674, %vm1701
  %vm1740 = vmand %vm1675, %vm1701
  %vm1741 = vmand %vm1676, %vm1701
  %vm1742 = vmand %vm1677, %vm1701
  %vm1743 = vmand %vm1678, %vm1701
  %vm1744 = vmand %vm1679, %vm1701
  %vm1745 = vmand %vm1680, %vm1701
  %vm1746 = vmand %vm1681, %vm1701
  %vm1747 = vmand %vm1682, %vm1701
  %vm1748 = vmand %vm1683, %vm1701
  %vm1749 = vmand %vm1684, %vm1701
  %vm1750 = vmand %vm1685, %vm1701
  %vm1751 = vmand %vm1686, %vm1701
  %vm1752 = vmand %vm1687, %vm1701
  %vm1753 = vmand %vm1688, %vm1701
  %vm1754 = vmand %vm1689, %vm1701
  %vm1755 = vmand %vm1690, %vm1701
  %vm1756 = vmand %vm1691, %vm1701
  %vm1757 = vmand %vm1692, %vm1701
  %vm1758 = vmand %vm1693, %vm1701
  %vm1759 = vmand %vm1694, %vm1701
  %vm1760 = vmand %vm1695, %vm1701
  %vm1761 = vmand %vm1696, %vm1701
  %vm1762 = vmand %vm1697, %vm1701
  %vm1763 = vmand %vm1698, %vm1701
  %vm1764 = vmand %vm1699, %vm1701
  %vm1765 = vmand %vm1700, %vm1701
  %v1766 = vsel %vm1702, %v1219, 0.0
  %v1767 = vsel %vm1703, %v1221, 0.0
  %v1768 = vsel %vm1704, %v1224, 0.0
  %v1769 = vsel %vm1705, %v1226, 0.0
  %v1770 = vsel %vm1706, %v1229, 0.0
  %v1771 = vsel %vm1707, %v1231, 0.0
  %v1772 = vsel %vm1708, %v1234, 0.0
  %v1773 = vsel %vm1709, %v1236, 0.0
  %v1774 = vsel %vm1710, %v1239, 0.0
  %v1775 = vsel %vm1711, %v1241, 0.0
  %v1776 = vsel %vm1712, %v1244, 0.0
  %v1777 = vsel %vm1713, %v1246, 0.0
  %v1778 = vsel %vm1714, %v1249, 0.0
  %v1779 = vsel %vm1715, %v1251, 0.0
  %v1780 = vsel %vm1716, %v1254, 0.0
  %v1781 = vsel %vm1717, %v1256, 0.0
  %v1782 = vsel %vm1718, %v1259, 0.0
  %v1783 = vsel %vm1719, %v1261, 0.0
  %v1784 = vsel %vm1720, %v1264, 0.0
  %v1785 = vsel %vm1721, %v1266, 0.0
  %v1786 = vsel %vm1722, %v1269, 0.0
  %v1787 = vsel %vm1723, %v1271, 0.0
  %v1788 = vsel %vm1724, %v1274, 0.0
  %v1789 = vsel %vm1725, %v1276, 0.0
  %v1790 = vsel %vm1726, %v1279, 0.0
  %v1791 = vsel %vm1727, %v1281, 0.0
  %v1792 = vsel %vm1728, %v1284, 0.0
  %v1793 = vsel %vm1729, %v1286, 0.0
  %v1794 = vsel %vm1730, %v1289, 0.0
  %v1795 = vsel %vm1731, %v1291, 0.0
  %v1796 = vsel %vm1732, %v1294, 0.0
  %v1797 = vsel %vm1733, %v1296, 0.0
  %v1798 = vsel %vm1734, %v1299, 0.0
  %v1799 = vsel %vm1735, %v1301, 0.0
  %v1800 = vsel %vm1736, %v1304, 0.0
  %v1801 = vsel %vm1737, %v1306, 0.0
  %v1802 = vsel %vm1738, %v1309, 0.0
  %v1803 = vsel %vm1739, %v1311, 0.0
  %v1804 = vsel %vm1740, %v1314, 0.0
  %v1805 = vsel %vm1741, %v1316, 0.0
  %v1806 = vsel %vm1742, %v1319, 0.0
  %v1807 = vsel %vm1743, %v1321, 0.0
  %v1808 = vsel %vm1744, %v1324, 0.0
  %v1809 = vsel %vm1745, %v1326, 0.0
  %v1810 = vsel %vm1746, %v1329, 0.0
  %v1811 = vsel %vm1747, %v1331, 0.0
  %v1812 = vsel %vm1748, %v1334, 0.0
  %v1813 = vsel %vm1749, %v1336, 0.0
  %v1814 = vsel %vm1750, %v1339, 0.0
  %v1815 = vsel %vm1751, %v1341, 0.0
  %v1816 = vsel %vm1752, %v1344, 0.0
  %v1817 = vsel %vm1753, %v1346, 0.0
  %v1818 = vsel %vm1754, %v1349, 0.0
  %v1819 = vsel %vm1755, %v1351, 0.0
  %v1820 = vsel %vm1756, %v1354, 0.0
  %v1821 = vsel %vm1757, %v1356, 0.0
  %v1822 = vsel %vm1758, %v1359, 0.0
  %v1823 = vsel %vm1759, %v1361, 0.0
  %v1824 = vsel %vm1760, %v1364, 0.0
  %v1825 = vsel %vm1761, %v1366, 0.0
  %v1826 = vsel %vm1762, %v1369, 0.0
  %v1827 = vsel %vm1763, %v1371, 0.0
  %v1828 = vsel %vm1764, %v1374, 0.0
  %v1829 = vsel %vm1765, %v1376, 0.0
  %v1830 = vld [vmem:[%s2 + $0xc8] sm:$0xf]
  %v1831 = vld [vmem:[%s2 + $0xcc] sm:$0xf]
  %v1832 = vld [vmem:[%s2 + $0xd0] sm:$0xf]
  %v1833 = vld [vmem:[%s2 + $0xd4] sm:$0xf]
  %v1834 = vld [vmem:[%s2 + $0xd8] sm:$0xf]
  %v1835 = vld [vmem:[%s2 + $0xdc] sm:$0xf]
  %v1836 = vld [vmem:[%s2 + $0xe0] sm:$0xf]
  %v1837 = vld [vmem:[%s2 + $0xe4] sm:$0xf]
  %v1838 = vld [vmem:[%s2 + $0xe8] sm:$0xf]
  %v1839 = vld [vmem:[%s2 + $0xec] sm:$0xf]
  %v1840 = vld [vmem:[%s2 + $0xf0] sm:$0xf]
  %v1841 = vld [vmem:[%s2 + $0xf4] sm:$0xf]
  %v1842 = vld [vmem:[%s2 + $0xf8] sm:$0xf]
  %v1843 = vld [vmem:[%s2 + $0xfc] sm:$0xf]
  %v1844 = vld [vmem:[%s2 + $0x100] sm:$0xf]
  %v1845 = vld [vmem:[%s2 + $0x104] sm:$0xf]
  %v1846 = vunpack.c.l.bf16 %v1830
  %v1847 = vunpack.c.l.bf16 %v1831
  %v1848 = vunpack.c.l.bf16 %v1832
  %v1849 = vunpack.c.l.bf16 %v1833
  %v1850 = vunpack.c.l.bf16 %v1834
  %v1851 = vunpack.c.l.bf16 %v1835
  %v1852 = vunpack.c.l.bf16 %v1836
  %v1853 = vunpack.c.l.bf16 %v1837
  %v1854 = vunpack.c.l.bf16 %v1838
  %v1855 = vunpack.c.l.bf16 %v1839
  %v1856 = vunpack.c.l.bf16 %v1840
  %v1857 = vunpack.c.l.bf16 %v1841
  %v1858 = vunpack.c.l.bf16 %v1842
  %v1859 = vunpack.c.l.bf16 %v1843
  %v1860 = vunpack.c.l.bf16 %v1844
  %v1861 = vunpack.c.l.bf16 %v1845
  %1862 = vmatpush.msra.mxu0 %v1861
  %1863 = vmatpush.msra.mxu0 %v1860
  %1864 = vmatpush.msra.mxu0 %v1859
  %1865 = vmatpush.msra.mxu0 %v1858
  %1866 = vmatpush.msra.mxu0 %v1857
  %1867 = vmatpush.msra.mxu0 %v1856
  %1868 = vmatpush.msra.mxu0 %v1855
  %1869 = vmatpush.msra.mxu0 %v1854
  %1870 = vmatpush.msra.mxu0 %v1853
  %1871 = vmatpush.msra.mxu0 %v1852
  %1872 = vmatpush.msra.mxu0 %v1851
  %1873 = vmatpush.msra.mxu0 %v1850
  %1874 = vmatpush.msra.mxu0 %v1849
  %1875 = vmatpush.msra.mxu0 %v1848
  %1876 = vmatpush.msra.mxu0 %v1847
  %1877 = vmatpush.msra.mxu0 %v1846
  %1878 = vmatmul.f32.gmra.mxu0 %v1766
  %v1879 = vpop.f32.mrf.mxu0
  %v1880 = vadd.f32 0.0, %v1879
  %1881 = vmatmul.f32.gmra.mxu0 %v1767
  %v1882 = vpop.f32.mrf.mxu0
  %v1883 = vadd.f32 0.0, %v1882
  %1884 = vmatmul.f32.gmra.mxu0 %v1768
  %v1885 = vpop.f32.mrf.mxu0
  %v1886 = vadd.f32 0.0, %v1885
  %1887 = vmatmul.f32.gmra.mxu0 %v1769
  %v1888 = vpop.f32.mrf.mxu0
  %v1889 = vadd.f32 0.0, %v1888
  %1890 = vmatmul.f32.gmra.mxu0 %v1770
  %v1891 = vpop.f32.mrf.mxu0
  %v1892 = vadd.f32 0.0, %v1891
  %1893 = vmatmul.f32.gmra.mxu0 %v1771
  %v1894 = vpop.f32.mrf.mxu0
  %v1895 = vadd.f32 0.0, %v1894
  %1896 = vmatmul.f32.gmra.mxu0 %v1772
  %v1897 = vpop.f32.mrf.mxu0
  %v1898 = vadd.f32 0.0, %v1897
  %1899 = vmatmul.f32.gmra.mxu0 %v1773
  %v1900 = vpop.f32.mrf.mxu0
  %v1901 = vadd.f32 0.0, %v1900
  %1902 = vmatmul.f32.gmra.mxu0 %v1774
  %v1903 = vpop.f32.mrf.mxu0
  %v1904 = vadd.f32 0.0, %v1903
  %1905 = vmatmul.f32.gmra.mxu0 %v1775
  %v1906 = vpop.f32.mrf.mxu0
  %v1907 = vadd.f32 0.0, %v1906
  %1908 = vmatmul.f32.gmra.mxu0 %v1776
  %v1909 = vpop.f32.mrf.mxu0
  %v1910 = vadd.f32 0.0, %v1909
  %1911 = vmatmul.f32.gmra.mxu0 %v1777
  %v1912 = vpop.f32.mrf.mxu0
  %v1913 = vadd.f32 0.0, %v1912
  %1914 = vmatmul.f32.gmra.mxu0 %v1778
  %v1915 = vpop.f32.mrf.mxu0
  %v1916 = vadd.f32 0.0, %v1915
  %1917 = vmatmul.f32.gmra.mxu0 %v1779
  %v1918 = vpop.f32.mrf.mxu0
  %v1919 = vadd.f32 0.0, %v1918
  %1920 = vmatmul.f32.gmra.mxu0 %v1780
  %v1921 = vpop.f32.mrf.mxu0
  %v1922 = vadd.f32 0.0, %v1921
  %1923 = vmatmul.f32.gmra.mxu0 %v1781
  %v1924 = vpop.f32.mrf.mxu0
  %v1925 = vadd.f32 0.0, %v1924
  %1926 = vmatmul.f32.gmra.mxu0 %v1782
  %v1927 = vpop.f32.mrf.mxu0
  %v1928 = vadd.f32 0.0, %v1927
  %1929 = vmatmul.f32.gmra.mxu0 %v1783
  %v1930 = vpop.f32.mrf.mxu0
  %v1931 = vadd.f32 0.0, %v1930
  %1932 = vmatmul.f32.gmra.mxu0 %v1784
  %v1933 = vpop.f32.mrf.mxu0
  %v1934 = vadd.f32 0.0, %v1933
  %1935 = vmatmul.f32.gmra.mxu0 %v1785
  %v1936 = vpop.f32.mrf.mxu0
  %v1937 = vadd.f32 0.0, %v1936
  %1938 = vmatmul.f32.gmra.mxu0 %v1786
  %v1939 = vpop.f32.mrf.mxu0
  %v1940 = vadd.f32 0.0, %v1939
  %1941 = vmatmul.f32.gmra.mxu0 %v1787
  %v1942 = vpop.f32.mrf.mxu0
  %v1943 = vadd.f32 0.0, %v1942
  %1944 = vmatmul.f32.gmra.mxu0 %v1788
  %v1945 = vpop.f32.mrf.mxu0
  %v1946 = vadd.f32 0.0, %v1945
  %1947 = vmatmul.f32.gmra.mxu0 %v1789
  %v1948 = vpop.f32.mrf.mxu0
  %v1949 = vadd.f32 0.0, %v1948
  %1950 = vmatmul.f32.gmra.mxu0 %v1790
  %v1951 = vpop.f32.mrf.mxu0
  %v1952 = vadd.f32 0.0, %v1951
  %1953 = vmatmul.f32.gmra.mxu0 %v1791
  %v1954 = vpop.f32.mrf.mxu0
  %v1955 = vadd.f32 0.0, %v1954
  %1956 = vmatmul.f32.gmra.mxu0 %v1792
  %v1957 = vpop.f32.mrf.mxu0
  %v1958 = vadd.f32 0.0, %v1957
  %1959 = vmatmul.f32.gmra.mxu0 %v1793
  %v1960 = vpop.f32.mrf.mxu0
  %v1961 = vadd.f32 0.0, %v1960
  %1962 = vmatmul.f32.gmra.mxu0 %v1794
  %v1963 = vpop.f32.mrf.mxu0
  %v1964 = vadd.f32 0.0, %v1963
  %1965 = vmatmul.f32.gmra.mxu0 %v1795
  %v1966 = vpop.f32.mrf.mxu0
  %v1967 = vadd.f32 0.0, %v1966
  %1968 = vmatmul.f32.gmra.mxu0 %v1796
  %v1969 = vpop.f32.mrf.mxu0
  %v1970 = vadd.f32 0.0, %v1969
  %1971 = vmatmul.f32.gmra.mxu0 %v1797
  %v1972 = vpop.f32.mrf.mxu0
  %v1973 = vadd.f32 0.0, %v1972
  %1974 = vmatmul.f32.gmra.mxu0 %v1798
  %v1975 = vpop.f32.mrf.mxu0
  %v1976 = vadd.f32 0.0, %v1975
  %1977 = vmatmul.f32.gmra.mxu0 %v1799
  %v1978 = vpop.f32.mrf.mxu0
  %v1979 = vadd.f32 0.0, %v1978
  %1980 = vmatmul.f32.gmra.mxu0 %v1800
  %v1981 = vpop.f32.mrf.mxu0
  %v1982 = vadd.f32 0.0, %v1981
  %1983 = vmatmul.f32.gmra.mxu0 %v1801
  %v1984 = vpop.f32.mrf.mxu0
  %v1985 = vadd.f32 0.0, %v1984
  %1986 = vmatmul.f32.gmra.mxu0 %v1802
  %v1987 = vpop.f32.mrf.mxu0
  %v1988 = vadd.f32 0.0, %v1987
  %1989 = vmatmul.f32.gmra.mxu0 %v1803
  %v1990 = vpop.f32.mrf.mxu0
  %v1991 = vadd.f32 0.0, %v1990
  %1992 = vmatmul.f32.gmra.mxu0 %v1804
  %v1993 = vpop.f32.mrf.mxu0
  %v1994 = vadd.f32 0.0, %v1993
  %1995 = vmatmul.f32.gmra.mxu0 %v1805
  %v1996 = vpop.f32.mrf.mxu0
  %v1997 = vadd.f32 0.0, %v1996
  %1998 = vmatmul.f32.gmra.mxu0 %v1806
  %v1999 = vpop.f32.mrf.mxu0
  %v2000 = vadd.f32 0.0, %v1999
  %2001 = vmatmul.f32.gmra.mxu0 %v1807
  %v2002 = vpop.f32.mrf.mxu0
  %v2003 = vadd.f32 0.0, %v2002
  %2004 = vmatmul.f32.gmra.mxu0 %v1808
  %v2005 = vpop.f32.mrf.mxu0
  %v2006 = vadd.f32 0.0, %v2005
  %2007 = vmatmul.f32.gmra.mxu0 %v1809
  %v2008 = vpop.f32.mrf.mxu0
  %v2009 = vadd.f32 0.0, %v2008
  %2010 = vmatmul.f32.gmra.mxu0 %v1810
  %v2011 = vpop.f32.mrf.mxu0
  %v2012 = vadd.f32 0.0, %v2011
  %2013 = vmatmul.f32.gmra.mxu0 %v1811
  %v2014 = vpop.f32.mrf.mxu0
  %v2015 = vadd.f32 0.0, %v2014
  %2016 = vmatmul.f32.gmra.mxu0 %v1812
  %v2017 = vpop.f32.mrf.mxu0
  %v2018 = vadd.f32 0.0, %v2017
  %2019 = vmatmul.f32.gmra.mxu0 %v1813
  %v2020 = vpop.f32.mrf.mxu0
  %v2021 = vadd.f32 0.0, %v2020
  %2022 = vmatmul.f32.gmra.mxu0 %v1814
  %v2023 = vpop.f32.mrf.mxu0
  %v2024 = vadd.f32 0.0, %v2023
  %2025 = vmatmul.f32.gmra.mxu0 %v1815
  %v2026 = vpop.f32.mrf.mxu0
  %v2027 = vadd.f32 0.0, %v2026
  %2028 = vmatmul.f32.gmra.mxu0 %v1816
  %v2029 = vpop.f32.mrf.mxu0
  %v2030 = vadd.f32 0.0, %v2029
  %2031 = vmatmul.f32.gmra.mxu0 %v1817
  %v2032 = vpop.f32.mrf.mxu0
  %v2033 = vadd.f32 0.0, %v2032
  %2034 = vmatmul.f32.gmra.mxu0 %v1818
  %v2035 = vpop.f32.mrf.mxu0
  %v2036 = vadd.f32 0.0, %v2035
  %2037 = vmatmul.f32.gmra.mxu0 %v1819
  %v2038 = vpop.f32.mrf.mxu0
  %v2039 = vadd.f32 0.0, %v2038
  %2040 = vmatmul.f32.gmra.mxu0 %v1820
  %v2041 = vpop.f32.mrf.mxu0
  %v2042 = vadd.f32 0.0, %v2041
  %2043 = vmatmul.f32.gmra.mxu0 %v1821
  %v2044 = vpop.f32.mrf.mxu0
  %v2045 = vadd.f32 0.0, %v2044
  %2046 = vmatmul.f32.gmra.mxu0 %v1822
  %v2047 = vpop.f32.mrf.mxu0
  %v2048 = vadd.f32 0.0, %v2047
  %2049 = vmatmul.f32.gmra.mxu0 %v1823
  %v2050 = vpop.f32.mrf.mxu0
  %v2051 = vadd.f32 0.0, %v2050
  %2052 = vmatmul.f32.gmra.mxu0 %v1824
  %v2053 = vpop.f32.mrf.mxu0
  %v2054 = vadd.f32 0.0, %v2053
  %2055 = vmatmul.f32.gmra.mxu0 %v1825
  %v2056 = vpop.f32.mrf.mxu0
  %v2057 = vadd.f32 0.0, %v2056
  %2058 = vmatmul.f32.gmra.mxu0 %v1826
  %v2059 = vpop.f32.mrf.mxu0
  %v2060 = vadd.f32 0.0, %v2059
  %2061 = vmatmul.f32.gmra.mxu0 %v1827
  %v2062 = vpop.f32.mrf.mxu0
  %v2063 = vadd.f32 0.0, %v2062
  %2064 = vmatmul.f32.gmra.mxu0 %v1828
  %v2065 = vpop.f32.mrf.mxu0
  %v2066 = vadd.f32 0.0, %v2065
  %2067 = vmatmul.f32.gmra.mxu0 %v1829
  %v2068 = vpop.f32.mrf.mxu0
  %v2069 = vadd.f32 0.0, %v2068
  %2070 = vdwg.mxu0
  %vm2071 = vcmask 39936
  %2072 = vst.msk [vmem:[%s3] sm:$0xff] %vm2071, %v1880
  %2073 = vst.msk [vmem:[%s3 + $0x8] sm:$0xff] %vm2071, %v1883
  %2074 = vst.msk [vmem:[%s3 + $0x10] sm:$0xff] %vm2071, %v1886
  %2075 = vst.msk [vmem:[%s3 + $0x18] sm:$0xff] %vm2071, %v1889
  %2076 = vst.msk [vmem:[%s3 + $0x20] sm:$0xff] %vm2071, %v1892
  %2077 = vst.msk [vmem:[%s3 + $0x28] sm:$0xff] %vm2071, %v1895
  %2078 = vst.msk [vmem:[%s3 + $0x30] sm:$0xff] %vm2071, %v1898
  %2079 = vst.msk [vmem:[%s3 + $0x38] sm:$0xff] %vm2071, %v1901
  %2080 = vst.msk [vmem:[%s3 + $0x40] sm:$0xff] %vm2071, %v1904
  %2081 = vst.msk [vmem:[%s3 + $0x48] sm:$0xff] %vm2071, %v1907
  %2082 = vst.msk [vmem:[%s3 + $0x50] sm:$0xff] %vm2071, %v1910
  %2083 = vst.msk [vmem:[%s3 + $0x58] sm:$0xff] %vm2071, %v1913
  %2084 = vst.msk [vmem:[%s3 + $0x60] sm:$0xff] %vm2071, %v1916
  %2085 = vst.msk [vmem:[%s3 + $0x68] sm:$0xff] %vm2071, %v1919
  %2086 = vst.msk [vmem:[%s3 + $0x70] sm:$0xff] %vm2071, %v1922
  %2087 = vst.msk [vmem:[%s3 + $0x78] sm:$0xff] %vm2071, %v1925
  %2088 = vst.msk [vmem:[%s3 + $0x80] sm:$0xff] %vm2071, %v1928
  %2089 = vst.msk [vmem:[%s3 + $0x88] sm:$0xff] %vm2071, %v1931
  %2090 = vst.msk [vmem:[%s3 + $0x90] sm:$0xff] %vm2071, %v1934
  %2091 = vst.msk [vmem:[%s3 + $0x98] sm:$0xff] %vm2071, %v1937
  %2092 = vst.msk [vmem:[%s3 + $0xa0] sm:$0xff] %vm2071, %v1940
  %2093 = vst.msk [vmem:[%s3 + $0xa8] sm:$0xff] %vm2071, %v1943
  %2094 = vst.msk [vmem:[%s3 + $0xb0] sm:$0xff] %vm2071, %v1946
  %2095 = vst.msk [vmem:[%s3 + $0xb8] sm:$0xff] %vm2071, %v1949
  %2096 = vst.msk [vmem:[%s3 + $0xc0] sm:$0xff] %vm2071, %v1952
  %2097 = vst.msk [vmem:[%s3 + $0xc8] sm:$0xff] %vm2071, %v1955
  %2098 = vst.msk [vmem:[%s3 + $0xd0] sm:$0xff] %vm2071, %v1958
  %2099 = vst.msk [vmem:[%s3 + $0xd8] sm:$0xff] %vm2071, %v1961
  %2100 = vst.msk [vmem:[%s3 + $0xe0] sm:$0xff] %vm2071, %v1964
  %2101 = vst.msk [vmem:[%s3 + $0xe8] sm:$0xff] %vm2071, %v1967
  %2102 = vst.msk [vmem:[%s3 + $0xf0] sm:$0xff] %vm2071, %v1970
  %2103 = vst.msk [vmem:[%s3 + $0xf8] sm:$0xff] %vm2071, %v1973
  %2104 = vst.msk [vmem:[%s3 + $0x100] sm:$0xff] %vm2071, %v1976
  %2105 = vst.msk [vmem:[%s3 + $0x108] sm:$0xff] %vm2071, %v1979
  %2106 = vst.msk [vmem:[%s3 + $0x110] sm:$0xff] %vm2071, %v1982
  %2107 = vst.msk [vmem:[%s3 + $0x118] sm:$0xff] %vm2071, %v1985
  %2108 = vst.msk [vmem:[%s3 + $0x120] sm:$0xff] %vm2071, %v1988
  %2109 = vst.msk [vmem:[%s3 + $0x128] sm:$0xff] %vm2071, %v1991
  %2110 = vst.msk [vmem:[%s3 + $0x130] sm:$0xff] %vm2071, %v1994
  %2111 = vst.msk [vmem:[%s3 + $0x138] sm:$0xff] %vm2071, %v1997
  %2112 = vst.msk [vmem:[%s3 + $0x140] sm:$0xff] %vm2071, %v2000
  %2113 = vst.msk [vmem:[%s3 + $0x148] sm:$0xff] %vm2071, %v2003
  %2114 = vst.msk [vmem:[%s3 + $0x150] sm:$0xff] %vm2071, %v2006
  %2115 = vst.msk [vmem:[%s3 + $0x158] sm:$0xff] %vm2071, %v2009
  %2116 = vst.msk [vmem:[%s3 + $0x160] sm:$0xff] %vm2071, %v2012
  %2117 = vst.msk [vmem:[%s3 + $0x168] sm:$0xff] %vm2071, %v2015
  %2118 = vst.msk [vmem:[%s3 + $0x170] sm:$0xff] %vm2071, %v2018
  %2119 = vst.msk [vmem:[%s3 + $0x178] sm:$0xff] %vm2071, %v2021
  %2120 = vst.msk [vmem:[%s3 + $0x180] sm:$0xff] %vm2071, %v2024
  %2121 = vst.msk [vmem:[%s3 + $0x188] sm:$0xff] %vm2071, %v2027
  %2122 = vst.msk [vmem:[%s3 + $0x190] sm:$0xff] %vm2071, %v2030
  %2123 = vst.msk [vmem:[%s3 + $0x198] sm:$0xff] %vm2071, %v2033
  %2124 = vst.msk [vmem:[%s3 + $0x1a0] sm:$0xff] %vm2071, %v2036
  %2125 = vst.msk [vmem:[%s3 + $0x1a8] sm:$0xff] %vm2071, %v2039
  %2126 = vst.msk [vmem:[%s3 + $0x1b0] sm:$0xff] %vm2071, %v2042
  %2127 = vst.msk [vmem:[%s3 + $0x1b8] sm:$0xff] %vm2071, %v2045
  %2128 = vst.msk [vmem:[%s3 + $0x1c0] sm:$0xff] %vm2071, %v2048
  %2129 = vst.msk [vmem:[%s3 + $0x1c8] sm:$0xff] %vm2071, %v2051
  %2130 = vst.msk [vmem:[%s3 + $0x1d0] sm:$0xff] %vm2071, %v2054
  %2131 = vst.msk [vmem:[%s3 + $0x1d8] sm:$0xff] %vm2071, %v2057
  %2132 = vst.msk [vmem:[%s3 + $0x1e0] sm:$0xff] %vm2071, %v2060
  %2133 = vst.msk [vmem:[%s3 + $0x1e8] sm:$0xff] %vm2071, %v2063
  %2134 = vst.msk [vmem:[%s3 + $0x1f0] sm:$0xff] %vm2071, %v2066
  %2135 = vst.msk [vmem:[%s3 + $0x1f8] sm:$0xff] %vm2071, %v2069
  // Predicated region
  $region14: #{bootstrapped_net_forward.1} parent=0 // pred_check
    _
  $region15: #{bootstrapped_net_forward.1} parent=0 // pred_check_branch
    %2137 = sbr.rel (0) target = $region17
  $region16: #{bootstrapped_net_forward.1} parent=0 // pred_region
    _
  $region17: #{bootstrapped_net_forward.1} parent=0 // pred_fallthru
    _
  // Predicated region
  $region18: #{bootstrapped_net_forward.1} parent=0 // pred_check
    _
  $region19: #{bootstrapped_net_forward.1} parent=0 // pred_check_branch
    %2139 = sbr.rel (0) target = $region21
  $region20: #{bootstrapped_net_forward.1} parent=0 // pred_region
    _
  $region21: #{bootstrapped_net_forward.1} parent=0 // pred_fallthru
    _

</llo_original>
